<compile_context>
chip_gen: v7x
topology: tpu7x:2x2x1
jax: 0.10.0
libtpu: 0.0.40
codegen_flags: <defaults>
</compile_context>

<pallas_src>
import jax
import jax.numpy as jnp
import numpy as np
from jax.experimental import pallas as pl
from jax.experimental.pallas import tpu as pltpu


# -----------------------------------------------------------------------------
# Fused kernel: embedding + all RNN layers + all time steps in one invocation.
# -----------------------------------------------------------------------------
def _encoder_fused_kernel(*refs):
    """Ref layout (inputs..., outputs...):
      tok_ref : (S*B, 1) int32  time-major flattened token ids (row = t*B + b)
      emb_ref : (V, E)   f32    embedding table
      h0_ref  : (L, B, H) f32   initial hidden state
      per layer l: w_ih_t (Din, H), w_hh_t (H, H), b (1, H)
      out_ref : (S, B, H) f32   time-major hidden states of the last layer
      hn_ref  : (L, B, H) f32   final hidden state of every layer
    """
    tok_ref, emb_ref, h0_ref = refs[0], refs[1], refs[2]
    out_ref, hn_ref = refs[-2], refs[-1]
    layer_refs = refs[3:-2]
    num_layers = len(layer_refs) // 3

    _, B, _ = hn_ref.shape
    S = out_ref.shape[0]
    SB = S * B
    V = emb_ref.shape[0]

    # ---- Embedding gather as a one-hot matmul (vocab is tiny; stays in VMEM/MXU).
    tok = tok_ref[...]                                                   # (S*B, 1) int32
    onehot = (jax.lax.broadcasted_iota(jnp.int32, (SB, V), 1) == tok).astype(jnp.float32)
    x_all = jnp.dot(onehot, emb_ref[...], preferred_element_type=jnp.float32)  # (S*B, E)

    x_steps = None
    for l in range(num_layers):
        w_ih = layer_refs[3 * l][...]
        w_hh = layer_refs[3 * l + 1][...]
        bias = layer_refs[3 * l + 2][...]

        h = h0_ref[l]                                                    # (B, H)
        steps = []
        if l == 0:
            # Hoisted input projection for the entire sequence: one matmul.
            xw = jnp.dot(x_all, w_ih, preferred_element_type=jnp.float32) + bias  # (S*B, H)
            for t in range(S):                     # statically unrolled (S is small)
                h = jnp.tanh(
                    xw[t * B:(t + 1) * B, :]
                    + jnp.dot(h, w_hh, preferred_element_type=jnp.float32))
                steps.append(h)
        else:
            prev = x_steps                          # per-step outputs of the layer below
            for t in range(S):
                h = jnp.tanh(
                    jnp.dot(prev[t], w_ih, preferred_element_type=jnp.float32) + bias
                    + jnp.dot(h, w_hh, preferred_element_type=jnp.float32))
                steps.append(h)

        hn_ref[l] = h.astype(hn_ref.dtype)
        x_steps = steps

    # Last layer's per-step states -> output block (written back to HBM once).
    for t in range(S):
        out_ref[t] = x_steps[t].astype(out_ref.dtype)


# -----------------------------------------------------------------------------
# Encoder forward: single pallas_call wrapping the fused kernel.
# -----------------------------------------------------------------------------
def encoder_forward(params, tokens, prev_state):
    """
    tokens:     (B, S) int32 token ids
    prev_state: (L, B, H) initial hidden states
    returns:    output (B, S, H), h_n (L, B, H)  -- same as torch nn.RNN(batch_first=True)
    """
    B, S = tokens.shape
    emb = params["embedding"].astype(jnp.float32)
    V, E = emb.shape
    layers = params["layers"]
    L = len(layers)
    H = layers[0]["w_hh_t"].shape[0]

    # Time-major flattened token ids (row = t*B + b); a ~free op on 16 int32s.
    tok_tm = tokens.T.reshape(S * B, 1).astype(jnp.int32)
    h0 = prev_state.astype(jnp.float32)

    operands = [tok_tm, emb, h0]
    in_specs = [
        pl.BlockSpec((S * B, 1), lambda i: (0, 0)),
        pl.BlockSpec((V, E), lambda i: (0, 0)),
        pl.BlockSpec((L, B, H), lambda i: (0, 0, 0)),
    ]
    for lp in layers:
        operands += [lp["w_ih_t"], lp["w_hh_t"], lp["b"]]
        in_specs += [
            pl.BlockSpec(lp["w_ih_t"].shape, lambda i: (0, 0)),
            pl.BlockSpec(lp["w_hh_t"].shape, lambda i: (0, 0)),
            pl.BlockSpec(lp["b"].shape, lambda i: (0, 0)),
        ]

    out_tm, h_n = pl.pallas_call(
        _encoder_fused_kernel,
        out_shape=(
            jax.ShapeDtypeStruct((S, B, H), jnp.float32),
            jax.ShapeDtypeStruct((L, B, H), jnp.float32),
        ),
        grid_spec=pltpu.PrefetchScalarGridSpec(
            num_scalar_prefetch=0,
            grid=(1,),                              # entire problem in one invocation
            in_specs=in_specs,
            out_specs=[
                pl.BlockSpec((S, B, H), lambda i: (0, 0, 0)),
                pl.BlockSpec((L, B, H), lambda i: (0, 0, 0)),
            ],
        ),
        compiler_params=pltpu.CompilerParams(dimension_semantics=("arbitrary",)),
    )(*operands)

    output = jnp.transpose(out_tm, (1, 0, 2))       # (B, S, H), batch_first
    return output, h_n


# -----------------------------------------------------------------------------
# Pure-JAX reference (lax.scan) for correctness checking
# -----------------------------------------------------------------------------
def encoder_forward_ref(params, tokens, prev_state):
    emb = jnp.take(params["embedding"], tokens, axis=0)
    x_tm = jnp.transpose(emb, (1, 0, 2)).astype(jnp.float32)

    h_n = []
    layer_in = x_tm
    for l, lp in enumerate(params["layers"]):
        def step(h, x_t, lp=lp):
            h_new = jnp.tanh(x_t @ lp["w_ih_t"] + h @ lp["w_hh_t"] + lp["b"])
            return h_new, h_new

        h_last, y_tm = jax.lax.scan(step, prev_state[l], layer_in)
        h_n.append(h_last)
        layer_in = y_tm
    return jnp.transpose(layer_in, (1, 0, 2)), jnp.stack(h_n, axis=0)


# -----------------------------------------------------------------------------
# Deterministic parameter init (matches PyTorch init distributions)
# -----------------------------------------------------------------------------
def init_params(key, input_dim, emb_size, num_layers, hidden):
    keys = jax.random.split(key, 1 + 4 * num_layers)
    params = {
        "embedding": jax.random.normal(keys[0], (input_dim, emb_size), jnp.float32),
        "layers": [],
    }
    bound = 1.0 / np.sqrt(hidden)  # nn.RNN default init: U(-1/sqrt(H), 1/sqrt(H))
    for l in range(num_layers):
        k = keys[1 + 4 * l: 1 + 4 * (l + 1)]
        in_dim = emb_size if l == 0 else hidden
        w_ih = jax.random.uniform(k[0], (hidden, in_dim), jnp.float32, -bound, bound)
        w_hh = jax.random.uniform(k[1], (hidden, hidden), jnp.float32, -bound, bound)
        b_ih = jax.random.uniform(k[2], (hidden,), jnp.float32, -bound, bound)
        b_hh = jax.random.uniform(k[3], (hidden,), jnp.float32, -bound, bound)
        params["layers"].append({
            "w_ih_t": w_ih.T,                       # (in_dim, H), pre-transposed for x @ W^T
            "w_hh_t": w_hh.T,                       # (H, H)
            "b": (b_ih + b_hh).reshape(1, hidden),  # combined bias, (1, H)
        })
    return params


if __name__ == "__main__":
    # vocab=20, emb=32, layers=2, hidden=32, batch=2, seq=8  (cellType == 'RNN')
    INPUT_DIM, EMB, LAYERS, HIDDEN, BATCH, SEQ = 20, 32, 2, 32, 2, 8

    key = jax.random.PRNGKey(0)
    pkey, tkey = jax.random.split(key)
    params = init_params(pkey, INPUT_DIM, EMB, LAYERS, HIDDEN)

    tokens = jax.random.randint(tkey, (BATCH, SEQ), 0, INPUT_DIM, dtype=jnp.int32)
    h0 = jnp.zeros((LAYERS, BATCH, HIDDEN), jnp.float32)  # getInitialState()

    fwd = jax.jit(encoder_forward)
    out, h_n = fwd(params, tokens, h0)
    out, h_n = jax.block_until_ready(out), jax.block_until_ready(h_n)

    out_ref, h_n_ref = encoder_forward_ref(params, tokens, h0)
    np.testing.assert_allclose(np.asarray(out), np.asarray(out_ref), rtol=1e-4, atol=1e-5)
    np.testing.assert_allclose(np.asarray(h_n), np.asarray(h_n_ref), rtol=1e-4, atol=1e-5)

    print("KERNEL_OK")
</pallas_src>

<mosaic_0001>
module attributes {stable_mosaic.version = 11 : i64} {
  func.func @_encoder_fused_kernel(%arg0: i32, %arg1: memref<16x1xi32, #tpu.memory_space<vmem>>, %arg2: memref<20x32xf32, #tpu.memory_space<vmem>>, %arg3: memref<2x2x32xf32, #tpu.memory_space<vmem>>, %arg4: memref<32x32xf32, #tpu.memory_space<vmem>>, %arg5: memref<32x32xf32, #tpu.memory_space<vmem>>, %arg6: memref<1x32xf32, #tpu.memory_space<vmem>>, %arg7: memref<32x32xf32, #tpu.memory_space<vmem>>, %arg8: memref<32x32xf32, #tpu.memory_space<vmem>>, %arg9: memref<1x32xf32, #tpu.memory_space<vmem>>, %arg10: memref<8x2x32xf32, #tpu.memory_space<vmem>>, %arg11: memref<2x2x32xf32, #tpu.memory_space<vmem>>) attributes {dimension_semantics = [#tpu.dimension_semantics<arbitrary>], iteration_bounds = array<i64: 1>, scalar_prefetch = 0 : i64, scratch_operands = 0 : i64, tpu.core_type = #tpu.core_type<tc>, window_params = [{pipeline_mode = #tpu.pipeline_mode<synchronous>, transform_indices = @transform_0, window_bounds = array<i64: 16, 1>}, {pipeline_mode = #tpu.pipeline_mode<synchronous>, transform_indices = @transform_1, window_bounds = array<i64: 20, 32>}, {pipeline_mode = #tpu.pipeline_mode<synchronous>, transform_indices = @transform_2, window_bounds = array<i64: 2, 2, 32>}, {pipeline_mode = #tpu.pipeline_mode<synchronous>, transform_indices = @transform_3, window_bounds = array<i64: 32, 32>}, {pipeline_mode = #tpu.pipeline_mode<synchronous>, transform_indices = @transform_4, window_bounds = array<i64: 32, 32>}, {pipeline_mode = #tpu.pipeline_mode<synchronous>, transform_indices = @transform_5, window_bounds = array<i64: 1, 32>}, {pipeline_mode = #tpu.pipeline_mode<synchronous>, transform_indices = @transform_6, window_bounds = array<i64: 32, 32>}, {pipeline_mode = #tpu.pipeline_mode<synchronous>, transform_indices = @transform_7, window_bounds = array<i64: 32, 32>}, {pipeline_mode = #tpu.pipeline_mode<synchronous>, transform_indices = @transform_8, window_bounds = array<i64: 1, 32>}, {pipeline_mode = #tpu.pipeline_mode<synchronous>, transform_indices = @transform_9, window_bounds = array<i64: 8, 2, 32>}, {pipeline_mode = #tpu.pipeline_mode<synchronous>, transform_indices = @transform_10, window_bounds = array<i64: 2, 2, 32>}]} {
    %c0 = arith.constant 0 : index
    %c0_0 = arith.constant 0 : index
    %0 = vector.load %arg1[%c0, %c0_0] : memref<16x1xi32, #tpu.memory_space<vmem>>, vector<16x1xi32>
    %1 = tpu.iota {dimensions = array<i32: 1>} : vector<16x20xi32>
    %2 = vector.broadcast %0 : vector<16x1xi32> to vector<16x20xi32>
    %3 = arith.cmpi eq, %1, %2 : vector<16x20xi32>
    %4 = arith.extui %3 : vector<16x20xi1> to vector<16x20xi32>
    %5 = arith.sitofp %4 : vector<16x20xi32> to vector<16x20xf32>
    %c0_1 = arith.constant 0 : index
    %c0_2 = arith.constant 0 : index
    %6 = vector.load %arg2[%c0_1, %c0_2] : memref<20x32xf32, #tpu.memory_space<vmem>>, vector<20x32xf32>
    %cst = arith.constant dense<0.000000e+00> : vector<16x32xf32>
    %7 = tpu.matmul %5, %6, %cst {dimension_numbers = #tpu.dot_dimension_numbers<[1], [0], [0], [1], [0, 0, 1, 1], [], []>} : vector<16x20xf32>, vector<20x32xf32>, vector<16x32xf32> -> vector<16x32xf32>
    %c0_3 = arith.constant 0 : index
    %c0_4 = arith.constant 0 : index
    %8 = vector.load %arg4[%c0_3, %c0_4] : memref<32x32xf32, #tpu.memory_space<vmem>>, vector<32x32xf32>
    %c0_5 = arith.constant 0 : index
    %c0_6 = arith.constant 0 : index
    %9 = vector.load %arg5[%c0_5, %c0_6] : memref<32x32xf32, #tpu.memory_space<vmem>>, vector<32x32xf32>
    %c0_7 = arith.constant 0 : index
    %c0_8 = arith.constant 0 : index
    %10 = vector.load %arg6[%c0_7, %c0_8] : memref<1x32xf32, #tpu.memory_space<vmem>>, vector<1x32xf32>
    %c0_9 = arith.constant 0 : index
    %c0_10 = arith.constant 0 : index
    %c0_11 = arith.constant 0 : index
    %11 = vector.load %arg3[%c0_9, %c0_10, %c0_11] : memref<2x2x32xf32, #tpu.memory_space<vmem>>, vector<1x2x32xf32>
    %12 = vector.shape_cast %11 : vector<1x2x32xf32> to vector<2x32xf32>
    %cst_12 = arith.constant dense<0.000000e+00> : vector<16x32xf32>
    %13 = tpu.matmul %7, %8, %cst_12 {dimension_numbers = #tpu.dot_dimension_numbers<[1], [0], [0], [1], [0, 0, 1, 1], [], []>} : vector<16x32xf32>, vector<32x32xf32>, vector<16x32xf32> -> vector<16x32xf32>
    %14 = vector.broadcast %10 : vector<1x32xf32> to vector<16x32xf32>
    %15 = arith.addf %13, %14 : vector<16x32xf32>
    %16 = vector.extract_strided_slice %15 {offsets = [0, 0], sizes = [2, 32], strides = [1, 1]} : vector<16x32xf32> to vector<2x32xf32>
    %cst_13 = arith.constant dense<0.000000e+00> : vector<2x32xf32>
    %17 = tpu.matmul %12, %9, %cst_13 {dimension_numbers = #tpu.dot_dimension_numbers<[1], [0], [0], [1], [0, 0, 1, 1], [], []>} : vector<2x32xf32>, vector<32x32xf32>, vector<2x32xf32> -> vector<2x32xf32>
    %18 = arith.addf %16, %17 : vector<2x32xf32>
    %19 = math.tanh %18 : vector<2x32xf32>
    %20 = vector.extract_strided_slice %15 {offsets = [2, 0], sizes = [2, 32], strides = [1, 1]} : vector<16x32xf32> to vector<2x32xf32>
    %cst_14 = arith.constant dense<0.000000e+00> : vector<2x32xf32>
    %21 = tpu.matmul %19, %9, %cst_14 {dimension_numbers = #tpu.dot_dimension_numbers<[1], [0], [0], [1], [0, 0, 1, 1], [], []>} : vector<2x32xf32>, vector<32x32xf32>, vector<2x32xf32> -> vector<2x32xf32>
    %22 = arith.addf %20, %21 : vector<2x32xf32>
    %23 = math.tanh %22 : vector<2x32xf32>
    %24 = vector.extract_strided_slice %15 {offsets = [4, 0], sizes = [2, 32], strides = [1, 1]} : vector<16x32xf32> to vector<2x32xf32>
    %cst_15 = arith.constant dense<0.000000e+00> : vector<2x32xf32>
    %25 = tpu.matmul %23, %9, %cst_15 {dimension_numbers = #tpu.dot_dimension_numbers<[1], [0], [0], [1], [0, 0, 1, 1], [], []>} : vector<2x32xf32>, vector<32x32xf32>, vector<2x32xf32> -> vector<2x32xf32>
    %26 = arith.addf %24, %25 : vector<2x32xf32>
    %27 = math.tanh %26 : vector<2x32xf32>
    %28 = vector.extract_strided_slice %15 {offsets = [6, 0], sizes = [2, 32], strides = [1, 1]} : vector<16x32xf32> to vector<2x32xf32>
    %cst_16 = arith.constant dense<0.000000e+00> : vector<2x32xf32>
    %29 = tpu.matmul %27, %9, %cst_16 {dimension_numbers = #tpu.dot_dimension_numbers<[1], [0], [0], [1], [0, 0, 1, 1], [], []>} : vector<2x32xf32>, vector<32x32xf32>, vector<2x32xf32> -> vector<2x32xf32>
    %30 = arith.addf %28, %29 : vector<2x32xf32>
    %31 = math.tanh %30 : vector<2x32xf32>
    %32 = vector.extract_strided_slice %15 {offsets = [8, 0], sizes = [2, 32], strides = [1, 1]} : vector<16x32xf32> to vector<2x32xf32>
    %cst_17 = arith.constant dense<0.000000e+00> : vector<2x32xf32>
    %33 = tpu.matmul %31, %9, %cst_17 {dimension_numbers = #tpu.dot_dimension_numbers<[1], [0], [0], [1], [0, 0, 1, 1], [], []>} : vector<2x32xf32>, vector<32x32xf32>, vector<2x32xf32> -> vector<2x32xf32>
    %34 = arith.addf %32, %33 : vector<2x32xf32>
    %35 = math.tanh %34 : vector<2x32xf32>
    %36 = vector.extract_strided_slice %15 {offsets = [10, 0], sizes = [2, 32], strides = [1, 1]} : vector<16x32xf32> to vector<2x32xf32>
    %cst_18 = arith.constant dense<0.000000e+00> : vector<2x32xf32>
    %37 = tpu.matmul %35, %9, %cst_18 {dimension_numbers = #tpu.dot_dimension_numbers<[1], [0], [0], [1], [0, 0, 1, 1], [], []>} : vector<2x32xf32>, vector<32x32xf32>, vector<2x32xf32> -> vector<2x32xf32>
    %38 = arith.addf %36, %37 : vector<2x32xf32>
    %39 = math.tanh %38 : vector<2x32xf32>
    %40 = vector.extract_strided_slice %15 {offsets = [12, 0], sizes = [2, 32], strides = [1, 1]} : vector<16x32xf32> to vector<2x32xf32>
    %cst_19 = arith.constant dense<0.000000e+00> : vector<2x32xf32>
    %41 = tpu.matmul %39, %9, %cst_19 {dimension_numbers = #tpu.dot_dimension_numbers<[1], [0], [0], [1], [0, 0, 1, 1], [], []>} : vector<2x32xf32>, vector<32x32xf32>, vector<2x32xf32> -> vector<2x32xf32>
    %42 = arith.addf %40, %41 : vector<2x32xf32>
    %43 = math.tanh %42 : vector<2x32xf32>
    %44 = vector.extract_strided_slice %15 {offsets = [14, 0], sizes = [2, 32], strides = [1, 1]} : vector<16x32xf32> to vector<2x32xf32>
    %cst_20 = arith.constant dense<0.000000e+00> : vector<2x32xf32>
    %45 = tpu.matmul %43, %9, %cst_20 {dimension_numbers = #tpu.dot_dimension_numbers<[1], [0], [0], [1], [0, 0, 1, 1], [], []>} : vector<2x32xf32>, vector<32x32xf32>, vector<2x32xf32> -> vector<2x32xf32>
    %46 = arith.addf %44, %45 : vector<2x32xf32>
    %47 = math.tanh %46 : vector<2x32xf32>
    %c0_21 = arith.constant 0 : index
    %c0_22 = arith.constant 0 : index
    %c0_23 = arith.constant 0 : index
    %48 = vector.load %arg11[%c0_21, %c0_22, %c0_23] : memref<2x2x32xf32, #tpu.memory_space<vmem>>, vector<1x2x32xf32>
    %49 = vector.shape_cast %48 : vector<1x2x32xf32> to vector<2x32xf32>
    %50 = vector.shape_cast %47 : vector<2x32xf32> to vector<1x2x32xf32>
    tpu.vector_store %arg11[%c0_21, %c0_22, %c0_23], %50 {strides = array<i32>} : memref<2x2x32xf32, #tpu.memory_space<vmem>>, vector<1x2x32xf32>,
    %c0_24 = arith.constant 0 : index
    %c0_25 = arith.constant 0 : index
    %51 = vector.load %arg7[%c0_24, %c0_25] : memref<32x32xf32, #tpu.memory_space<vmem>>, vector<32x32xf32>
    %c0_26 = arith.constant 0 : index
    %c0_27 = arith.constant 0 : index
    %52 = vector.load %arg8[%c0_26, %c0_27] : memref<32x32xf32, #tpu.memory_space<vmem>>, vector<32x32xf32>
    %c0_28 = arith.constant 0 : index
    %c0_29 = arith.constant 0 : index
    %53 = vector.load %arg9[%c0_28, %c0_29] : memref<1x32xf32, #tpu.memory_space<vmem>>, vector<1x32xf32>
    %c1 = arith.constant 1 : index
    %c0_30 = arith.constant 0 : index
    %c0_31 = arith.constant 0 : index
    %54 = vector.load %arg3[%c1, %c0_30, %c0_31] : memref<2x2x32xf32, #tpu.memory_space<vmem>>, vector<1x2x32xf32>
    %55 = vector.shape_cast %54 : vector<1x2x32xf32> to vector<2x32xf32>
    %cst_32 = arith.constant dense<0.000000e+00> : vector<2x32xf32>
    %56 = tpu.matmul %19, %51, %cst_32 {dimension_numbers = #tpu.dot_dimension_numbers<[1], [0], [0], [1], [0, 0, 1, 1], [], []>} : vector<2x32xf32>, vector<32x32xf32>, vector<2x32xf32> -> vector<2x32xf32>
    %57 = vector.broadcast %53 : vector<1x32xf32> to vector<2x32xf32>
    %58 = arith.addf %56, %57 : vector<2x32xf32>
    %cst_33 = arith.constant dense<0.000000e+00> : vector<2x32xf32>
    %59 = tpu.matmul %55, %52, %cst_33 {dimension_numbers = #tpu.dot_dimension_numbers<[1], [0], [0], [1], [0, 0, 1, 1], [], []>} : vector<2x32xf32>, vector<32x32xf32>, vector<2x32xf32> -> vector<2x32xf32>
    %60 = arith.addf %58, %59 : vector<2x32xf32>
    %61 = math.tanh %60 : vector<2x32xf32>
    %cst_34 = arith.constant dense<0.000000e+00> : vector<2x32xf32>
    %62 = tpu.matmul %23, %51, %cst_34 {dimension_numbers = #tpu.dot_dimension_numbers<[1], [0], [0], [1], [0, 0, 1, 1], [], []>} : vector<2x32xf32>, vector<32x32xf32>, vector<2x32xf32> -> vector<2x32xf32>
    %63 = vector.broadcast %53 : vector<1x32xf32> to vector<2x32xf32>
    %64 = arith.addf %62, %63 : vector<2x32xf32>
    %cst_35 = arith.constant dense<0.000000e+00> : vector<2x32xf32>
    %65 = tpu.matmul %61, %52, %cst_35 {dimension_numbers = #tpu.dot_dimension_numbers<[1], [0], [0], [1], [0, 0, 1, 1], [], []>} : vector<2x32xf32>, vector<32x32xf32>, vector<2x32xf32> -> vector<2x32xf32>
    %66 = arith.addf %64, %65 : vector<2x32xf32>
    %67 = math.tanh %66 : vector<2x32xf32>
    %cst_36 = arith.constant dense<0.000000e+00> : vector<2x32xf32>
    %68 = tpu.matmul %27, %51, %cst_36 {dimension_numbers = #tpu.dot_dimension_numbers<[1], [0], [0], [1], [0, 0, 1, 1], [], []>} : vector<2x32xf32>, vector<32x32xf32>, vector<2x32xf32> -> vector<2x32xf32>
    %69 = vector.broadcast %53 : vector<1x32xf32> to vector<2x32xf32>
    %70 = arith.addf %68, %69 : vector<2x32xf32>
    %cst_37 = arith.constant dense<0.000000e+00> : vector<2x32xf32>
    %71 = tpu.matmul %67, %52, %cst_37 {dimension_numbers = #tpu.dot_dimension_numbers<[1], [0], [0], [1], [0, 0, 1, 1], [], []>} : vector<2x32xf32>, vector<32x32xf32>, vector<2x32xf32> -> vector<2x32xf32>
    %72 = arith.addf %70, %71 : vector<2x32xf32>
    %73 = math.tanh %72 : vector<2x32xf32>
    %cst_38 = arith.constant dense<0.000000e+00> : vector<2x32xf32>
    %74 = tpu.matmul %31, %51, %cst_38 {dimension_numbers = #tpu.dot_dimension_numbers<[1], [0], [0], [1], [0, 0, 1, 1], [], []>} : vector<2x32xf32>, vector<32x32xf32>, vector<2x32xf32> -> vector<2x32xf32>
    %75 = vector.broadcast %53 : vector<1x32xf32> to vector<2x32xf32>
    %76 = arith.addf %74, %75 : vector<2x32xf32>
    %cst_39 = arith.constant dense<0.000000e+00> : vector<2x32xf32>
    %77 = tpu.matmul %73, %52, %cst_39 {dimension_numbers = #tpu.dot_dimension_numbers<[1], [0], [0], [1], [0, 0, 1, 1], [], []>} : vector<2x32xf32>, vector<32x32xf32>, vector<2x32xf32> -> vector<2x32xf32>
    %78 = arith.addf %76, %77 : vector<2x32xf32>
    %79 = math.tanh %78 : vector<2x32xf32>
    %cst_40 = arith.constant dense<0.000000e+00> : vector<2x32xf32>
    %80 = tpu.matmul %35, %51, %cst_40 {dimension_numbers = #tpu.dot_dimension_numbers<[1], [0], [0], [1], [0, 0, 1, 1], [], []>} : vector<2x32xf32>, vector<32x32xf32>, vector<2x32xf32> -> vector<2x32xf32>
    %81 = vector.broadcast %53 : vector<1x32xf32> to vector<2x32xf32>
    %82 = arith.addf %80, %81 : vector<2x32xf32>
    %cst_41 = arith.constant dense<0.000000e+00> : vector<2x32xf32>
    %83 = tpu.matmul %79, %52, %cst_41 {dimension_numbers = #tpu.dot_dimension_numbers<[1], [0], [0], [1], [0, 0, 1, 1], [], []>} : vector<2x32xf32>, vector<32x32xf32>, vector<2x32xf32> -> vector<2x32xf32>
    %84 = arith.addf %82, %83 : vector<2x32xf32>
    %85 = math.tanh %84 : vector<2x32xf32>
    %cst_42 = arith.constant dense<0.000000e+00> : vector<2x32xf32>
    %86 = tpu.matmul %39, %51, %cst_42 {dimension_numbers = #tpu.dot_dimension_numbers<[1], [0], [0], [1], [0, 0, 1, 1], [], []>} : vector<2x32xf32>, vector<32x32xf32>, vector<2x32xf32> -> vector<2x32xf32>
    %87 = vector.broadcast %53 : vector<1x32xf32> to vector<2x32xf32>
    %88 = arith.addf %86, %87 : vector<2x32xf32>
    %cst_43 = arith.constant dense<0.000000e+00> : vector<2x32xf32>
    %89 = tpu.matmul %85, %52, %cst_43 {dimension_numbers = #tpu.dot_dimension_numbers<[1], [0], [0], [1], [0, 0, 1, 1], [], []>} : vector<2x32xf32>, vector<32x32xf32>, vector<2x32xf32> -> vector<2x32xf32>
    %90 = arith.addf %88, %89 : vector<2x32xf32>
    %91 = math.tanh %90 : vector<2x32xf32>
    %cst_44 = arith.constant dense<0.000000e+00> : vector<2x32xf32>
    %92 = tpu.matmul %43, %51, %cst_44 {dimension_numbers = #tpu.dot_dimension_numbers<[1], [0], [0], [1], [0, 0, 1, 1], [], []>} : vector<2x32xf32>, vector<32x32xf32>, vector<2x32xf32> -> vector<2x32xf32>
    %93 = vector.broadcast %53 : vector<1x32xf32> to vector<2x32xf32>
    %94 = arith.addf %92, %93 : vector<2x32xf32>
    %cst_45 = arith.constant dense<0.000000e+00> : vector<2x32xf32>
    %95 = tpu.matmul %91, %52, %cst_45 {dimension_numbers = #tpu.dot_dimension_numbers<[1], [0], [0], [1], [0, 0, 1, 1], [], []>} : vector<2x32xf32>, vector<32x32xf32>, vector<2x32xf32> -> vector<2x32xf32>
    %96 = arith.addf %94, %95 : vector<2x32xf32>
    %97 = math.tanh %96 : vector<2x32xf32>
    %cst_46 = arith.constant dense<0.000000e+00> : vector<2x32xf32>
    %98 = tpu.matmul %47, %51, %cst_46 {dimension_numbers = #tpu.dot_dimension_numbers<[1], [0], [0], [1], [0, 0, 1, 1], [], []>} : vector<2x32xf32>, vector<32x32xf32>, vector<2x32xf32> -> vector<2x32xf32>
    %99 = vector.broadcast %53 : vector<1x32xf32> to vector<2x32xf32>
    %100 = arith.addf %98, %99 : vector<2x32xf32>
    %cst_47 = arith.constant dense<0.000000e+00> : vector<2x32xf32>
    %101 = tpu.matmul %97, %52, %cst_47 {dimension_numbers = #tpu.dot_dimension_numbers<[1], [0], [0], [1], [0, 0, 1, 1], [], []>} : vector<2x32xf32>, vector<32x32xf32>, vector<2x32xf32> -> vector<2x32xf32>
    %102 = arith.addf %100, %101 : vector<2x32xf32>
    %103 = math.tanh %102 : vector<2x32xf32>
    %c1_48 = arith.constant 1 : index
    %c0_49 = arith.constant 0 : index
    %c0_50 = arith.constant 0 : index
    %104 = vector.load %arg11[%c1_48, %c0_49, %c0_50] : memref<2x2x32xf32, #tpu.memory_space<vmem>>, vector<1x2x32xf32>
    %105 = vector.shape_cast %104 : vector<1x2x32xf32> to vector<2x32xf32>
    %106 = vector.shape_cast %103 : vector<2x32xf32> to vector<1x2x32xf32>
    tpu.vector_store %arg11[%c1_48, %c0_49, %c0_50], %106 {strides = array<i32>} : memref<2x2x32xf32, #tpu.memory_space<vmem>>, vector<1x2x32xf32>,
    %c0_51 = arith.constant 0 : index
    %c0_52 = arith.constant 0 : index
    %c0_53 = arith.constant 0 : index
    %107 = vector.load %arg10[%c0_51, %c0_52, %c0_53] : memref<8x2x32xf32, #tpu.memory_space<vmem>>, vector<1x2x32xf32>
    %108 = vector.shape_cast %107 : vector<1x2x32xf32> to vector<2x32xf32>
    %109 = vector.shape_cast %61 : vector<2x32xf32> to vector<1x2x32xf32>
    tpu.vector_store %arg10[%c0_51, %c0_52, %c0_53], %109 {strides = array<i32>} : memref<8x2x32xf32, #tpu.memory_space<vmem>>, vector<1x2x32xf32>,
    %c1_54 = arith.constant 1 : index
    %c0_55 = arith.constant 0 : index
    %c0_56 = arith.constant 0 : index
    %110 = vector.load %arg10[%c1_54, %c0_55, %c0_56] : memref<8x2x32xf32, #tpu.memory_space<vmem>>, vector<1x2x32xf32>
    %111 = vector.shape_cast %110 : vector<1x2x32xf32> to vector<2x32xf32>
    %112 = vector.shape_cast %67 : vector<2x32xf32> to vector<1x2x32xf32>
    tpu.vector_store %arg10[%c1_54, %c0_55, %c0_56], %112 {strides = array<i32>} : memref<8x2x32xf32, #tpu.memory_space<vmem>>, vector<1x2x32xf32>,
    %c2 = arith.constant 2 : index
    %c0_57 = arith.constant 0 : index
    %c0_58 = arith.constant 0 : index
    %113 = vector.load %arg10[%c2, %c0_57, %c0_58] : memref<8x2x32xf32, #tpu.memory_space<vmem>>, vector<1x2x32xf32>
    %114 = vector.shape_cast %113 : vector<1x2x32xf32> to vector<2x32xf32>
    %115 = vector.shape_cast %73 : vector<2x32xf32> to vector<1x2x32xf32>
    tpu.vector_store %arg10[%c2, %c0_57, %c0_58], %115 {strides = array<i32>} : memref<8x2x32xf32, #tpu.memory_space<vmem>>, vector<1x2x32xf32>,
    %c3 = arith.constant 3 : index
    %c0_59 = arith.constant 0 : index
    %c0_60 = arith.constant 0 : index
    %116 = vector.load %arg10[%c3, %c0_59, %c0_60] : memref<8x2x32xf32, #tpu.memory_space<vmem>>, vector<1x2x32xf32>
    %117 = vector.shape_cast %116 : vector<1x2x32xf32> to vector<2x32xf32>
    %118 = vector.shape_cast %79 : vector<2x32xf32> to vector<1x2x32xf32>
    tpu.vector_store %arg10[%c3, %c0_59, %c0_60], %118 {strides = array<i32>} : memref<8x2x32xf32, #tpu.memory_space<vmem>>, vector<1x2x32xf32>,
    %c4 = arith.constant 4 : index
    %c0_61 = arith.constant 0 : index
    %c0_62 = arith.constant 0 : index
    %119 = vector.load %arg10[%c4, %c0_61, %c0_62] : memref<8x2x32xf32, #tpu.memory_space<vmem>>, vector<1x2x32xf32>
    %120 = vector.shape_cast %119 : vector<1x2x32xf32> to vector<2x32xf32>
    %121 = vector.shape_cast %85 : vector<2x32xf32> to vector<1x2x32xf32>
    tpu.vector_store %arg10[%c4, %c0_61, %c0_62], %121 {strides = array<i32>} : memref<8x2x32xf32, #tpu.memory_space<vmem>>, vector<1x2x32xf32>,
    %c5 = arith.constant 5 : index
    %c0_63 = arith.constant 0 : index
    %c0_64 = arith.constant 0 : index
    %122 = vector.load %arg10[%c5, %c0_63, %c0_64] : memref<8x2x32xf32, #tpu.memory_space<vmem>>, vector<1x2x32xf32>
    %123 = vector.shape_cast %122 : vector<1x2x32xf32> to vector<2x32xf32>
    %124 = vector.shape_cast %91 : vector<2x32xf32> to vector<1x2x32xf32>
    tpu.vector_store %arg10[%c5, %c0_63, %c0_64], %124 {strides = array<i32>} : memref<8x2x32xf32, #tpu.memory_space<vmem>>, vector<1x2x32xf32>,
    %c6 = arith.constant 6 : index
    %c0_65 = arith.constant 0 : index
    %c0_66 = arith.constant 0 : index
    %125 = vector.load %arg10[%c6, %c0_65, %c0_66] : memref<8x2x32xf32, #tpu.memory_space<vmem>>, vector<1x2x32xf32>
    %126 = vector.shape_cast %125 : vector<1x2x32xf32> to vector<2x32xf32>
    %127 = vector.shape_cast %97 : vector<2x32xf32> to vector<1x2x32xf32>
    tpu.vector_store %arg10[%c6, %c0_65, %c0_66], %127 {strides = array<i32>} : memref<8x2x32xf32, #tpu.memory_space<vmem>>, vector<1x2x32xf32>,
    %c7 = arith.constant 7 : index
    %c0_67 = arith.constant 0 : index
    %c0_68 = arith.constant 0 : index
    %128 = vector.load %arg10[%c7, %c0_67, %c0_68] : memref<8x2x32xf32, #tpu.memory_space<vmem>>, vector<1x2x32xf32>
    %129 = vector.shape_cast %128 : vector<1x2x32xf32> to vector<2x32xf32>
    %130 = vector.shape_cast %103 : vector<2x32xf32> to vector<1x2x32xf32>
    tpu.vector_store %arg10[%c7, %c0_67, %c0_68], %130 {strides = array<i32>} : memref<8x2x32xf32, #tpu.memory_space<vmem>>, vector<1x2x32xf32>,
    return
  }
  func.func @transform_0(%arg0: i32) -> (i32, i32) {
    %c0_i32 = arith.constant 0 : i32
    %c0_i32_0 = arith.constant 0 : i32
    %c0_i32_1 = arith.constant 0 : i32
    return %c0_i32, %c0_i32_0 : i32, i32
  }
  func.func @transform_1(%arg0: i32) -> (i32, i32) {
    %c0_i32 = arith.constant 0 : i32
    %c0_i32_0 = arith.constant 0 : i32
    %c0_i32_1 = arith.constant 0 : i32
    return %c0_i32, %c0_i32_0 : i32, i32
  }
  func.func @transform_2(%arg0: i32) -> (i32, i32, i32) {
    %c0_i32 = arith.constant 0 : i32
    %c0_i32_0 = arith.constant 0 : i32
    %c0_i32_1 = arith.constant 0 : i32
    %c0_i32_2 = arith.constant 0 : i32
    return %c0_i32, %c0_i32_0, %c0_i32_1 : i32, i32, i32
  }
  func.func @transform_3(%arg0: i32) -> (i32, i32) {
    %c0_i32 = arith.constant 0 : i32
    %c0_i32_0 = arith.constant 0 : i32
    %c0_i32_1 = arith.constant 0 : i32
    return %c0_i32, %c0_i32_0 : i32, i32
  }
  func.func @transform_4(%arg0: i32) -> (i32, i32) {
    %c0_i32 = arith.constant 0 : i32
    %c0_i32_0 = arith.constant 0 : i32
    %c0_i32_1 = arith.constant 0 : i32
    return %c0_i32, %c0_i32_0 : i32, i32
  }
  func.func @transform_5(%arg0: i32) -> (i32, i32) {
    %c0_i32 = arith.constant 0 : i32
    %c0_i32_0 = arith.constant 0 : i32
    %c0_i32_1 = arith.constant 0 : i32
    return %c0_i32, %c0_i32_0 : i32, i32
  }
  func.func @transform_6(%arg0: i32) -> (i32, i32) {
    %c0_i32 = arith.constant 0 : i32
    %c0_i32_0 = arith.constant 0 : i32
    %c0_i32_1 = arith.constant 0 : i32
    return %c0_i32, %c0_i32_0 : i32, i32
  }
  func.func @transform_7(%arg0: i32) -> (i32, i32) {
    %c0_i32 = arith.constant 0 : i32
    %c0_i32_0 = arith.constant 0 : i32
    %c0_i32_1 = arith.constant 0 : i32
    return %c0_i32, %c0_i32_0 : i32, i32
  }
  func.func @transform_8(%arg0: i32) -> (i32, i32) {
    %c0_i32 = arith.constant 0 : i32
    %c0_i32_0 = arith.constant 0 : i32
    %c0_i32_1 = arith.constant 0 : i32
    return %c0_i32, %c0_i32_0 : i32, i32
  }
  func.func @transform_9(%arg0: i32) -> (i32, i32, i32) {
    %c0_i32 = arith.constant 0 : i32
    %c0_i32_0 = arith.constant 0 : i32
    %c0_i32_1 = arith.constant 0 : i32
    %c0_i32_2 = arith.constant 0 : i32
    return %c0_i32, %c0_i32_0, %c0_i32_1 : i32, i32, i32
  }
  func.func @transform_10(%arg0: i32) -> (i32, i32, i32) {
    %c0_i32 = arith.constant 0 : i32
    %c0_i32_0 = arith.constant 0 : i32
    %c0_i32_1 = arith.constant 0 : i32
    %c0_i32_2 = arith.constant 0 : i32
    return %c0_i32, %c0_i32_0, %c0_i32_1 : i32, i32, i32
  }
}

</mosaic_0001>

<llo_original>
// kernel: encoder_forward.1
$region0: #{encoder_forward.1}
  #allocation0 [shape = 'u32[]', space=smem, size = 0x4, offset = 0x4, fixed_abs, tag = 'smem constant byte address 0x4 - core index']
  #allocation1 [shape = 'u32[144,128]{1,0:T(1,128)}', space=vmem, size = 0x12000, scoped, tag = 'internal scratch']
  %s0 = inlined_call_operand.vmem [shape: s32[16,1], index: 0, kind: input, shape index: {}]
  %s1 = inlined_call_operand.hbm [shape: f32[20,32], index: 1, kind: input, shape index: {}]
  %s2 = inlined_call_operand.vmem [shape: f32[2,2,32], index: 2, kind: input, shape index: {}]
  %s3 = inlined_call_operand.vmem [shape: f32[32,32], index: 3, kind: input, shape index: {}]
  %s4 = inlined_call_operand.hbm [shape: f32[32,32], index: 4, kind: input, shape index: {}]
  %s5 = inlined_call_operand.vmem [shape: f32[1,32], index: 5, kind: input, shape index: {}]
  %s6 = inlined_call_operand.hbm [shape: f32[32,32], index: 6, kind: input, shape index: {}]
  %s7 = inlined_call_operand.hbm [shape: f32[32,32], index: 7, kind: input, shape index: {}]
  %s8 = inlined_call_operand.vmem [shape: f32[1,32], index: 8, kind: input, shape index: {}]
  %s9 = inlined_call_operand.vmem [shape: f32[8,2,32], index: 9, kind: output, shape index: {0}]
  %s10 = inlined_call_operand.hbm [shape: f32[2,2,32], index: 10, kind: output, shape index: {1}]
  %11 = xla_tuple %s9, %s10
  %s12 = sld [smem:[#allocation0]]
  $region70: #{encoder_forward.1} parent=0
    _
  %s14 = ssub.s32 1, %s12
  %s15 = scalar_select 0, %s14, %s12
  $region1: #{encoder_forward.1} parent=0
    #allocation2 [shape = 'u8[12288]{0}', space=vmem, size = 0x3000, scoped, tag = 'input window, operand 1, single buffered']
    #allocation3 [shape = 's32[1]{0}', space=sflag, size = 0x4, scoped, tag = 'scoped memory for encoder_forward.1']
    #allocation4 [shape = 's32[1]{0}', space=sflag, size = 0x4, scoped, tag = 'scoped memory for encoder_forward.1']
    #allocation5 [shape = 'u8[16384]{0}', space=vmem, size = 0x4000, scoped, tag = 'input window, operand 4, single buffered']
    #allocation6 [shape = 's32[1]{0}', space=sflag, size = 0x4, scoped, tag = 'scoped memory for encoder_forward.1']
    #allocation7 [shape = 'u8[16384]{0}', space=vmem, size = 0x4000, scoped, tag = 'input window, operand 6, single buffered']
    #allocation8 [shape = 'u8[16384]{0}', space=vmem, size = 0x4000, scoped, tag = 'input window, operand 7, single buffered']
    #allocation9 [shape = 's32[1]{0}', space=sflag, size = 0x4, scoped, tag = 'scoped memory for encoder_forward.1']
    #allocation10 [shape = 'u8[2048]{0}', space=vmem, size = 0x800, scoped, tag = 'output window, operand 1, single buffered']
    %16 = vsyncpa [#allocation3], 0
    %17 = vsyncpa [#allocation6], 0
    %18 = vsyncpa [#allocation9], 0
    %19 = vsyncpa [#allocation4], 0
    // Predicated region
    $region2: #{encoder_forward.1} parent=1 // pred_check
      _
    $region3: #{encoder_forward.1} parent=1 // pred_check_branch
      %21 = sbr.rel (0) target = $region5
    $region4: #{encoder_forward.1} parent=1 // pred_region
      _
    $region5: #{encoder_forward.1} parent=1 // pred_fallthru
      _
    // Predicated region
    $region6: #{encoder_forward.1} parent=1 // pred_check
      _
    $region7: #{encoder_forward.1} parent=1 // pred_check_branch
      %23 = sbr.rel (0) target = $region9
    $region8: #{encoder_forward.1} parent=1 // pred_region
      %s25 = ssub.s32 384, 384
      %26 = vsyncadd [#allocation3], %s25
      %s27 = sshll.u32 [#allocation2], 4
      %s28 = int_to_ptr.vmem [resolvable:$true] %s27
      %33 = dma.hbm_to_vmem [thread:$0]  %s1, 384, %s28, [#allocation3], 128, 128, 8
    $region9: #{encoder_forward.1} parent=1 // pred_fallthru
      _
    // Predicated region
    $region10: #{encoder_forward.1} parent=1 // pred_check
      _
    $region11: #{encoder_forward.1} parent=1 // pred_check_branch
      %35 = sbr.rel (0) target = $region13
    $region12: #{encoder_forward.1} parent=1 // pred_region
      _
    $region13: #{encoder_forward.1} parent=1 // pred_fallthru
      _
    // Predicated region
    $region14: #{encoder_forward.1} parent=1 // pred_check
      _
    $region15: #{encoder_forward.1} parent=1 // pred_check_branch
      %37 = sbr.rel (0) target = $region17
    $region16: #{encoder_forward.1} parent=1 // pred_region
      _
    $region17: #{encoder_forward.1} parent=1 // pred_fallthru
      _
    // Predicated region
    $region18: #{encoder_forward.1} parent=1 // pred_check
      _
    $region19: #{encoder_forward.1} parent=1 // pred_check_branch
      %39 = sbr.rel (0) target = $region21
    $region20: #{encoder_forward.1} parent=1 // pred_region
      %s41 = ssub.s32 512, 512
      %42 = vsyncadd [#allocation6], %s41
      %s43 = sshll.u32 [#allocation5], 4
      %s44 = int_to_ptr.vmem [resolvable:$true] %s43
      %49 = dma.hbm_to_vmem [thread:$0]  %s4, 512, %s44, [#allocation6], 128, 128, 8
    $region21: #{encoder_forward.1} parent=1 // pred_fallthru
      _
    // Predicated region
    $region22: #{encoder_forward.1} parent=1 // pred_check
      _
    $region23: #{encoder_forward.1} parent=1 // pred_check_branch
      %51 = sbr.rel (0) target = $region25
    $region24: #{encoder_forward.1} parent=1 // pred_region
      _
    $region25: #{encoder_forward.1} parent=1 // pred_fallthru
      _
    // Predicated region
    $region26: #{encoder_forward.1} parent=1 // pred_check
      _
    $region27: #{encoder_forward.1} parent=1 // pred_check_branch
      %53 = sbr.rel (0) target = $region29
    $region28: #{encoder_forward.1} parent=1 // pred_region
      %s55 = ssub.s32 512, 512
      %56 = vsyncadd [#allocation6], %s55
      %s57 = sshll.u32 [#allocation7], 4
      %s58 = int_to_ptr.vmem [resolvable:$true] %s57
      %63 = dma.hbm_to_vmem [thread:$0]  %s6, 512, %s58, [#allocation6], 128, 128, 8
    $region29: #{encoder_forward.1} parent=1 // pred_fallthru
      _
    // Predicated region
    $region30: #{encoder_forward.1} parent=1 // pred_check
      _
    $region31: #{encoder_forward.1} parent=1 // pred_check_branch
      %65 = sbr.rel (0) target = $region33
    $region32: #{encoder_forward.1} parent=1 // pred_region
      %s67 = ssub.s32 512, 512
      %68 = vsyncadd [#allocation9], %s67
      %s69 = sshll.u32 [#allocation8], 4
      %s70 = int_to_ptr.vmem [resolvable:$true] %s69
      %75 = dma.hbm_to_vmem [thread:$0]  %s7, 512, %s70, [#allocation9], 128, 128, 8
    $region33: #{encoder_forward.1} parent=1 // pred_fallthru
      _
    // Predicated region
    $region34: #{encoder_forward.1} parent=1 // pred_check
      _
    $region35: #{encoder_forward.1} parent=1 // pred_check_branch
      %77 = sbr.rel (0) target = $region37
    $region36: #{encoder_forward.1} parent=1 // pred_region
      _
    $region37: #{encoder_forward.1} parent=1 // pred_fallthru
      _
    // Predicated region
    $region38: #{encoder_forward.1} parent=1 // pred_check
      _
    $region39: #{encoder_forward.1} parent=1 // pred_check_branch
      %79 = sbr.rel (0) target = $region41
    $region40: #{encoder_forward.1} parent=1 // pred_region
      %80 = dma.done [#allocation3], 384
    $region41: #{encoder_forward.1} parent=1 // pred_fallthru
      _
    // Predicated region
    $region42: #{encoder_forward.1} parent=1 // pred_check
      _
    $region43: #{encoder_forward.1} parent=1 // pred_check_branch
      %82 = sbr.rel (0) target = $region45
    $region44: #{encoder_forward.1} parent=1 // pred_region
      %83 = dma.done [#allocation6], 512
    $region45: #{encoder_forward.1} parent=1 // pred_fallthru
      _
    // Predicated region
    $region46: #{encoder_forward.1} parent=1 // pred_check
      _
    $region47: #{encoder_forward.1} parent=1 // pred_check_branch
      %85 = sbr.rel (0) target = $region49
    $region48: #{encoder_forward.1} parent=1 // pred_region
      %86 = dma.done [#allocation6], 512
    $region49: #{encoder_forward.1} parent=1 // pred_fallthru
      _
    // Predicated region
    $region50: #{encoder_forward.1} parent=1 // pred_check
      _
    $region51: #{encoder_forward.1} parent=1 // pred_check_branch
      %88 = sbr.rel (0) target = $region53
    $region52: #{encoder_forward.1} parent=1 // pred_region
      %89 = dma.done [#allocation9], 512
    $region53: #{encoder_forward.1} parent=1 // pred_fallthru
      _
    %v90 = vld [vmem:[%s0] sm:$0xff]
    %v91 = vld [vmem:[%s0 + $0x8] sm:$0xff]
    %v92 = vlaneseq
    %v93 = vand.u32 %v92, 127
    %94 = vset.pattern.permute.xlu0 0
    %95 = vperm.xlu0 %94, %v90
    %v96 = vpop.permute.xlu0 %95
    %97 = vset.pattern.permute.xlu0 0
    %98 = vperm.xlu0 %97, %v91
    %v99 = vpop.permute.xlu0 %98
    %vm100 = vcmp.eq.s32.totalorder %v93, %v96
    %vm101 = vcmp.eq.s32.totalorder %v93, %v99
    %v102 = vsel %vm100, 1, 0
    %v103 = vsel %vm101, 1, 0
    %v104 = vcvt.s32.f32 %v102
    %v105 = vcvt.s32.f32 %v103
    %v106 = vld [vmem:[#allocation2] sm:$0xff]
    %v107 = vld [vmem:[#allocation2 + $0x8] sm:$0xff]
    %v108 = vld [vmem:[#allocation2 + $0x10] sm:$0xf]
    %vm109 = vcmask 162816
    %v111 = vsel %vm109, %v104, 0
    %v114 = vsel %vm109, %v105, 0
    %vm116 = vcmask 1043456
    %v118 = vsel %vm116, %v108, 0
    %120 = vmatprep.subr.mxu0 0.0
    %121 = vmatpush1.msra.mxu0 %v106
    %122 = vmatprep.subr.mxu0 0.0
    %123 = vmatpush1.msra.mxu0 %v107
    %124 = vmatprep.subr.mxu0 0.0
    %125 = vmatpush1.msra.mxu0 %v118
    %126 = vmatprep.subr.mxu0 0.0
    %127 = vmatpush1.msra.mxu0 0.0
    %128 = vmatprep.subr.mxu0 0.0
    %129 = vmatpush1.msra.mxu0 0.0
    %130 = vmatprep.subr.mxu0 0.0
    %131 = vmatpush1.msra.mxu0 0.0
    %132 = vmatprep.subr.mxu0 0.0
    %133 = vmatpush1.msra.mxu0 0.0
    %134 = vmatprep.subr.mxu0 0.0
    %135 = vmatpush1.msra.mxu0 0.0
    %136 = vmatprep.subr.mxu0 0.0
    %137 = vmatpush1.msra.mxu0 0.0
    %138 = vmatprep.subr.mxu0 0.0
    %139 = vmatpush1.msra.mxu0 0.0
    %140 = vmatprep.subr.mxu0 0.0
    %141 = vmatpush1.msra.mxu0 0.0
    %142 = vmatprep.subr.mxu0 0.0
    %143 = vmatpush1.msra.mxu0 0.0
    %144 = vmatprep.subr.mxu0 0.0
    %145 = vmatpush1.msra.mxu0 0.0
    %146 = vmatprep.subr.mxu0 0.0
    %147 = vmatpush1.msra.mxu0 0.0
    %148 = vmatprep.subr.mxu0 0.0
    %149 = vmatpush1.msra.mxu0 0.0
    %150 = vmatprep.subr.mxu0 0.0
    %151 = vmatpush1.msra.mxu0 0.0
    %152 = vmatprep.subr.mxu0 0.0
    %153 = vmatpush1.msra.mxu0 0.0
    %154 = vmatprep.subr.mxu0 0.0
    %155 = vmatpush1.msra.mxu0 0.0
    %156 = vmatprep.subr.mxu0 0.0
    %157 = vmatpush1.msra.mxu0 0.0
    %158 = vmatprep.subr.mxu0 0.0
    %159 = vmatpush1.msra.mxu0 0.0
    %160 = vmatprep.subr.mxu0 0.0
    %161 = vmatpush1.msra.mxu0 0.0
    %162 = vmatprep.subr.mxu0 0.0
    %163 = vmatpush1.msra.mxu0 0.0
    %164 = vmatprep.subr.mxu0 0.0
    %165 = vmatpush1.msra.mxu0 0.0
    %166 = vmatprep.subr.mxu0 0.0
    %167 = vmatpush1.msra.mxu0 0.0
    %168 = vmatprep.subr.mxu0 0.0
    %169 = vmatpush1.msra.mxu0 0.0
    %170 = vmatprep.subr.mxu0 0.0
    %171 = vmatpush1.msra.mxu0 0.0
    %172 = vmatprep.subr.mxu0 0.0
    %173 = vmatpush1.msra.mxu0 0.0
    %174 = vmatprep.subr.mxu0 0.0
    %175 = vmatpush1.msra.mxu0 0.0
    %176 = vmatprep.subr.mxu0 0.0
    %177 = vmatpush1.msra.mxu0 0.0
    %178 = vmatprep.subr.mxu0 0.0
    %179 = vmatpush1.msra.mxu0 0.0
    %180 = vmatprep.subr.mxu0 0.0
    %181 = vmatpush1.msra.mxu0 0.0
    %182 = vmatprep.subr.mxu0 0.0
    %183 = vmatpush1.msra.mxu0 0.0
    %184 = vmatprep.mubr.f32.mxu0 0.0
    %185 = vmatmul.mubr.f32.gmra.mrb[0].mxu0 %v111
    %v186 = vpop.f32.mrb[0].mxu0
    %v187 = vadd.f32 0.0, %v186
    %v188 = vpop.f32.mrb[0].mxu0
    %189 = vmatprep.mubr.f32.mxu0 0.0
    %190 = vmatmul.mubr.f32.gmra.mrb[0].mxu0 %v114
    %v191 = vpop.f32.mrb[0].mxu0
    %v192 = vadd.f32 0.0, %v191
    %v193 = vpop.f32.mrb[0].mxu0
    %194 = vdwg.mxu0
    %v195 = vld [vmem:[%s3] sm:$0xff]
    %v196 = vld [vmem:[%s3 + $0x8] sm:$0xff]
    %v197 = vld [vmem:[%s3 + $0x10] sm:$0xff]
    %v198 = vld [vmem:[%s3 + $0x18] sm:$0xff]
    %v199 = vld [vmem:[#allocation5] sm:$0xff]
    %v200 = vld [vmem:[#allocation5 + $0x8] sm:$0xff]
    %v201 = vld [vmem:[#allocation5 + $0x10] sm:$0xff]
    %v202 = vld [vmem:[#allocation5 + $0x18] sm:$0xff]
    %v203 = vld [vmem:[%s5] sm:$0x1]
    %v204 = vld [vmem:[%s2] sm:$0x3]
    %v206 = vlaneseq
    %v207 = vshrl.u32 %v206, 7
    %v208 = vsub.s32 0, %v207
    %v209 = vrot.slane %v203, %v208
    %vm211 = vcmask 261120
    %v213 = vsel %vm211, %v187, 0
    %v216 = vsel %vm211, %v192, 0
    %218 = vmatprep.subr.mxu0 0.0
    %219 = vmatpush1.msra.mxu0 %v195
    %220 = vmatprep.subr.mxu0 0.0
    %221 = vmatpush1.msra.mxu0 %v196
    %222 = vmatprep.subr.mxu0 0.0
    %223 = vmatpush1.msra.mxu0 %v197
    %224 = vmatprep.subr.mxu0 0.0
    %225 = vmatpush1.msra.mxu0 %v198
    %226 = vmatprep.subr.mxu0 0.0
    %227 = vmatpush1.msra.mxu0 0.0
    %228 = vmatprep.subr.mxu0 0.0
    %229 = vmatpush1.msra.mxu0 0.0
    %230 = vmatprep.subr.mxu0 0.0
    %231 = vmatpush1.msra.mxu0 0.0
    %232 = vmatprep.subr.mxu0 0.0
    %233 = vmatpush1.msra.mxu0 0.0
    %234 = vmatprep.subr.mxu0 0.0
    %235 = vmatpush1.msra.mxu0 0.0
    %236 = vmatprep.subr.mxu0 0.0
    %237 = vmatpush1.msra.mxu0 0.0
    %238 = vmatprep.subr.mxu0 0.0
    %239 = vmatpush1.msra.mxu0 0.0
    %240 = vmatprep.subr.mxu0 0.0
    %241 = vmatpush1.msra.mxu0 0.0
    %242 = vmatprep.subr.mxu0 0.0
    %243 = vmatpush1.msra.mxu0 0.0
    %244 = vmatprep.subr.mxu0 0.0
    %245 = vmatpush1.msra.mxu0 0.0
    %246 = vmatprep.subr.mxu0 0.0
    %247 = vmatpush1.msra.mxu0 0.0
    %248 = vmatprep.subr.mxu0 0.0
    %249 = vmatpush1.msra.mxu0 0.0
    %250 = vmatprep.subr.mxu0 0.0
    %251 = vmatpush1.msra.mxu0 0.0
    %252 = vmatprep.subr.mxu0 0.0
    %253 = vmatpush1.msra.mxu0 0.0
    %254 = vmatprep.subr.mxu0 0.0
    %255 = vmatpush1.msra.mxu0 0.0
    %256 = vmatprep.subr.mxu0 0.0
    %257 = vmatpush1.msra.mxu0 0.0
    %258 = vmatprep.subr.mxu0 0.0
    %259 = vmatpush1.msra.mxu0 0.0
    %260 = vmatprep.subr.mxu0 0.0
    %261 = vmatpush1.msra.mxu0 0.0
    %262 = vmatprep.subr.mxu0 0.0
    %263 = vmatpush1.msra.mxu0 0.0
    %264 = vmatprep.subr.mxu0 0.0
    %265 = vmatpush1.msra.mxu0 0.0
    %266 = vmatprep.subr.mxu0 0.0
    %267 = vmatpush1.msra.mxu0 0.0
    %268 = vmatprep.subr.mxu0 0.0
    %269 = vmatpush1.msra.mxu0 0.0
    %270 = vmatprep.subr.mxu0 0.0
    %271 = vmatpush1.msra.mxu0 0.0
    %272 = vmatprep.subr.mxu0 0.0
    %273 = vmatpush1.msra.mxu0 0.0
    %274 = vmatprep.subr.mxu0 0.0
    %275 = vmatpush1.msra.mxu0 0.0
    %276 = vmatprep.subr.mxu0 0.0
    %277 = vmatpush1.msra.mxu0 0.0
    %278 = vmatprep.subr.mxu0 0.0
    %279 = vmatpush1.msra.mxu0 0.0
    %280 = vmatprep.subr.mxu0 0.0
    %281 = vmatpush1.msra.mxu0 0.0
    %282 = vmatprep.mubr.f32.mxu0 0.0
    %283 = vmatmul.mubr.f32.gmra.mrb[0].mxu0 %v213
    %v284 = vpop.f32.mrb[0].mxu0
    %v285 = vadd.f32 %v209, %v284
    %v286 = vpop.f32.mrb[0].mxu0
    %287 = vmatprep.mubr.f32.mxu0 0.0
    %288 = vmatmul.mubr.f32.gmra.mrb[0].mxu0 %v216
    %v289 = vpop.f32.mrb[0].mxu0
    %v290 = vadd.f32 %v209, %v289
    %v291 = vpop.f32.mrb[0].mxu0
    %292 = vdwg.mxu0
    %v294 = vsel %vm211, %v204, 0
    %296 = vmatprep.subr.mxu0 0.0
    %297 = vmatpush1.msra.mxu0 %v199
    %298 = vmatprep.subr.mxu0 0.0
    %299 = vmatpush1.msra.mxu0 %v200
    %300 = vmatprep.subr.mxu0 0.0
    %301 = vmatpush1.msra.mxu0 %v201
    %302 = vmatprep.subr.mxu0 0.0
    %303 = vmatpush1.msra.mxu0 %v202
    %304 = vmatprep.subr.mxu0 0.0
    %305 = vmatpush1.msra.mxu0 0.0
    %306 = vmatprep.subr.mxu0 0.0
    %307 = vmatpush1.msra.mxu0 0.0
    %308 = vmatprep.subr.mxu0 0.0
    %309 = vmatpush1.msra.mxu0 0.0
    %310 = vmatprep.subr.mxu0 0.0
    %311 = vmatpush1.msra.mxu0 0.0
    %312 = vmatprep.subr.mxu0 0.0
    %313 = vmatpush1.msra.mxu0 0.0
    %314 = vmatprep.subr.mxu0 0.0
    %315 = vmatpush1.msra.mxu0 0.0
    %316 = vmatprep.subr.mxu0 0.0
    %317 = vmatpush1.msra.mxu0 0.0
    %318 = vmatprep.subr.mxu0 0.0
    %319 = vmatpush1.msra.mxu0 0.0
    %320 = vmatprep.subr.mxu0 0.0
    %321 = vmatpush1.msra.mxu0 0.0
    %322 = vmatprep.subr.mxu0 0.0
    %323 = vmatpush1.msra.mxu0 0.0
    %324 = vmatprep.subr.mxu0 0.0
    %325 = vmatpush1.msra.mxu0 0.0
    %326 = vmatprep.subr.mxu0 0.0
    %327 = vmatpush1.msra.mxu0 0.0
    %328 = vmatprep.subr.mxu0 0.0
    %329 = vmatpush1.msra.mxu0 0.0
    %330 = vmatprep.subr.mxu0 0.0
    %331 = vmatpush1.msra.mxu0 0.0
    %332 = vmatprep.subr.mxu0 0.0
    %333 = vmatpush1.msra.mxu0 0.0
    %334 = vmatprep.subr.mxu0 0.0
    %335 = vmatpush1.msra.mxu0 0.0
    %336 = vmatprep.subr.mxu0 0.0
    %337 = vmatpush1.msra.mxu0 0.0
    %338 = vmatprep.subr.mxu0 0.0
    %339 = vmatpush1.msra.mxu0 0.0
    %340 = vmatprep.subr.mxu0 0.0
    %341 = vmatpush1.msra.mxu0 0.0
    %342 = vmatprep.subr.mxu0 0.0
    %343 = vmatpush1.msra.mxu0 0.0
    %344 = vmatprep.subr.mxu0 0.0
    %345 = vmatpush1.msra.mxu0 0.0
    %346 = vmatprep.subr.mxu0 0.0
    %347 = vmatpush1.msra.mxu0 0.0
    %348 = vmatprep.subr.mxu0 0.0
    %349 = vmatpush1.msra.mxu0 0.0
    %350 = vmatprep.subr.mxu0 0.0
    %351 = vmatpush1.msra.mxu0 0.0
    %352 = vmatprep.subr.mxu0 0.0
    %353 = vmatpush1.msra.mxu0 0.0
    %354 = vmatprep.subr.mxu0 0.0
    %355 = vmatpush1.msra.mxu0 0.0
    %356 = vmatprep.subr.mxu0 0.0
    %357 = vmatpush1.msra.mxu0 0.0
    %358 = vmatprep.subr.mxu0 0.0
    %359 = vmatpush1.msra.mxu0 0.0
    %360 = vmatprep.mubr.f32.mxu0 0.0
    %361 = vmatmul.mubr.f32.gmra.mrb[0].mxu0 %v294
    %v362 = vpop.f32.mrb[0].mxu0
    %v363 = vadd.f32 0.0, %v362
    %v364 = vpop.f32.mrb[0].mxu0
    %365 = vdwg.mxu0
    %v366 = vadd.f32 %v285, %v363
    %v367 = vtanh.pop %v366
    %v369 = vsel %vm211, %v367, 0
    %371 = vmatprep.subr.mxu0 0.0
    %372 = vmatpush1.msra.mxu0 %v199
    %373 = vmatprep.subr.mxu0 0.0
    %374 = vmatpush1.msra.mxu0 %v200
    %375 = vmatprep.subr.mxu0 0.0
    %376 = vmatpush1.msra.mxu0 %v201
    %377 = vmatprep.subr.mxu0 0.0
    %378 = vmatpush1.msra.mxu0 %v202
    %379 = vmatprep.subr.mxu0 0.0
    %380 = vmatpush1.msra.mxu0 0.0
    %381 = vmatprep.subr.mxu0 0.0
    %382 = vmatpush1.msra.mxu0 0.0
    %383 = vmatprep.subr.mxu0 0.0
    %384 = vmatpush1.msra.mxu0 0.0
    %385 = vmatprep.subr.mxu0 0.0
    %386 = vmatpush1.msra.mxu0 0.0
    %387 = vmatprep.subr.mxu0 0.0
    %388 = vmatpush1.msra.mxu0 0.0
    %389 = vmatprep.subr.mxu0 0.0
    %390 = vmatpush1.msra.mxu0 0.0
    %391 = vmatprep.subr.mxu0 0.0
    %392 = vmatpush1.msra.mxu0 0.0
    %393 = vmatprep.subr.mxu0 0.0
    %394 = vmatpush1.msra.mxu0 0.0
    %395 = vmatprep.subr.mxu0 0.0
    %396 = vmatpush1.msra.mxu0 0.0
    %397 = vmatprep.subr.mxu0 0.0
    %398 = vmatpush1.msra.mxu0 0.0
    %399 = vmatprep.subr.mxu0 0.0
    %400 = vmatpush1.msra.mxu0 0.0
    %401 = vmatprep.subr.mxu0 0.0
    %402 = vmatpush1.msra.mxu0 0.0
    %403 = vmatprep.subr.mxu0 0.0
    %404 = vmatpush1.msra.mxu0 0.0
    %405 = vmatprep.subr.mxu0 0.0
    %406 = vmatpush1.msra.mxu0 0.0
    %407 = vmatprep.subr.mxu0 0.0
    %408 = vmatpush1.msra.mxu0 0.0
    %409 = vmatprep.subr.mxu0 0.0
    %410 = vmatpush1.msra.mxu0 0.0
    %411 = vmatprep.subr.mxu0 0.0
    %412 = vmatpush1.msra.mxu0 0.0
    %413 = vmatprep.subr.mxu0 0.0
    %414 = vmatpush1.msra.mxu0 0.0
    %415 = vmatprep.subr.mxu0 0.0
    %416 = vmatpush1.msra.mxu0 0.0
    %417 = vmatprep.subr.mxu0 0.0
    %418 = vmatpush1.msra.mxu0 0.0
    %419 = vmatprep.subr.mxu0 0.0
    %420 = vmatpush1.msra.mxu0 0.0
    %421 = vmatprep.subr.mxu0 0.0
    %422 = vmatpush1.msra.mxu0 0.0
    %423 = vmatprep.subr.mxu0 0.0
    %424 = vmatpush1.msra.mxu0 0.0
    %425 = vmatprep.subr.mxu0 0.0
    %426 = vmatpush1.msra.mxu0 0.0
    %427 = vmatprep.subr.mxu0 0.0
    %428 = vmatpush1.msra.mxu0 0.0
    %429 = vmatprep.subr.mxu0 0.0
    %430 = vmatpush1.msra.mxu0 0.0
    %431 = vmatprep.subr.mxu0 0.0
    %432 = vmatpush1.msra.mxu0 0.0
    %433 = vmatprep.subr.mxu0 0.0
    %434 = vmatpush1.msra.mxu0 0.0
    %435 = vmatprep.mubr.f32.mxu0 0.0
    %436 = vmatmul.mubr.f32.gmra.mrb[0].mxu0 %v369
    %v437 = vpop.f32.mrb[0].mxu0
    %v438 = vadd.f32 0.0, %v437
    %v439 = vpop.f32.mrb[0].mxu0
    %440 = vdwg.mxu0
    %v442 = vrot.slane %v438, 6
    %v444 = vadd.f32 %v285, %v442
    %v445 = vtanh.pop %v444
    %v447 = vrot.slane %v445, 2
    %v448 = vsel %vm211, %v447, 0
    %450 = vmatprep.subr.mxu0 0.0
    %451 = vmatpush1.msra.mxu0 %v199
    %452 = vmatprep.subr.mxu0 0.0
    %453 = vmatpush1.msra.mxu0 %v200
    %454 = vmatprep.subr.mxu0 0.0
    %455 = vmatpush1.msra.mxu0 %v201
    %456 = vmatprep.subr.mxu0 0.0
    %457 = vmatpush1.msra.mxu0 %v202
    %458 = vmatprep.subr.mxu0 0.0
    %459 = vmatpush1.msra.mxu0 0.0
    %460 = vmatprep.subr.mxu0 0.0
    %461 = vmatpush1.msra.mxu0 0.0
    %462 = vmatprep.subr.mxu0 0.0
    %463 = vmatpush1.msra.mxu0 0.0
    %464 = vmatprep.subr.mxu0 0.0
    %465 = vmatpush1.msra.mxu0 0.0
    %466 = vmatprep.subr.mxu0 0.0
    %467 = vmatpush1.msra.mxu0 0.0
    %468 = vmatprep.subr.mxu0 0.0
    %469 = vmatpush1.msra.mxu0 0.0
    %470 = vmatprep.subr.mxu0 0.0
    %471 = vmatpush1.msra.mxu0 0.0
    %472 = vmatprep.subr.mxu0 0.0
    %473 = vmatpush1.msra.mxu0 0.0
    %474 = vmatprep.subr.mxu0 0.0
    %475 = vmatpush1.msra.mxu0 0.0
    %476 = vmatprep.subr.mxu0 0.0
    %477 = vmatpush1.msra.mxu0 0.0
    %478 = vmatprep.subr.mxu0 0.0
    %479 = vmatpush1.msra.mxu0 0.0
    %480 = vmatprep.subr.mxu0 0.0
    %481 = vmatpush1.msra.mxu0 0.0
    %482 = vmatprep.subr.mxu0 0.0
    %483 = vmatpush1.msra.mxu0 0.0
    %484 = vmatprep.subr.mxu0 0.0
    %485 = vmatpush1.msra.mxu0 0.0
    %486 = vmatprep.subr.mxu0 0.0
    %487 = vmatpush1.msra.mxu0 0.0
    %488 = vmatprep.subr.mxu0 0.0
    %489 = vmatpush1.msra.mxu0 0.0
    %490 = vmatprep.subr.mxu0 0.0
    %491 = vmatpush1.msra.mxu0 0.0
    %492 = vmatprep.subr.mxu0 0.0
    %493 = vmatpush1.msra.mxu0 0.0
    %494 = vmatprep.subr.mxu0 0.0
    %495 = vmatpush1.msra.mxu0 0.0
    %496 = vmatprep.subr.mxu0 0.0
    %497 = vmatpush1.msra.mxu0 0.0
    %498 = vmatprep.subr.mxu0 0.0
    %499 = vmatpush1.msra.mxu0 0.0
    %500 = vmatprep.subr.mxu0 0.0
    %501 = vmatpush1.msra.mxu0 0.0
    %502 = vmatprep.subr.mxu0 0.0
    %503 = vmatpush1.msra.mxu0 0.0
    %504 = vmatprep.subr.mxu0 0.0
    %505 = vmatpush1.msra.mxu0 0.0
    %506 = vmatprep.subr.mxu0 0.0
    %507 = vmatpush1.msra.mxu0 0.0
    %508 = vmatprep.subr.mxu0 0.0
    %509 = vmatpush1.msra.mxu0 0.0
    %510 = vmatprep.subr.mxu0 0.0
    %511 = vmatpush1.msra.mxu0 0.0
    %512 = vmatprep.subr.mxu0 0.0
    %513 = vmatpush1.msra.mxu0 0.0
    %514 = vmatprep.mubr.f32.mxu0 0.0
    %515 = vmatmul.mubr.f32.gmra.mrb[0].mxu0 %v448
    %v516 = vpop.f32.mrb[0].mxu0
    %v517 = vadd.f32 0.0, %v516
    %v518 = vpop.f32.mrb[0].mxu0
    %519 = vdwg.mxu0
    %v521 = vrot.slane %v517, 4
    %v523 = vadd.f32 %v285, %v521
    %v524 = vtanh.pop %v523
    %v526 = vrot.slane %v524, 4
    %v527 = vsel %vm211, %v526, 0
    %529 = vmatprep.subr.mxu0 0.0
    %530 = vmatpush1.msra.mxu0 %v199
    %531 = vmatprep.subr.mxu0 0.0
    %532 = vmatpush1.msra.mxu0 %v200
    %533 = vmatprep.subr.mxu0 0.0
    %534 = vmatpush1.msra.mxu0 %v201
    %535 = vmatprep.subr.mxu0 0.0
    %536 = vmatpush1.msra.mxu0 %v202
    %537 = vmatprep.subr.mxu0 0.0
    %538 = vmatpush1.msra.mxu0 0.0
    %539 = vmatprep.subr.mxu0 0.0
    %540 = vmatpush1.msra.mxu0 0.0
    %541 = vmatprep.subr.mxu0 0.0
    %542 = vmatpush1.msra.mxu0 0.0
    %543 = vmatprep.subr.mxu0 0.0
    %544 = vmatpush1.msra.mxu0 0.0
    %545 = vmatprep.subr.mxu0 0.0
    %546 = vmatpush1.msra.mxu0 0.0
    %547 = vmatprep.subr.mxu0 0.0
    %548 = vmatpush1.msra.mxu0 0.0
    %549 = vmatprep.subr.mxu0 0.0
    %550 = vmatpush1.msra.mxu0 0.0
    %551 = vmatprep.subr.mxu0 0.0
    %552 = vmatpush1.msra.mxu0 0.0
    %553 = vmatprep.subr.mxu0 0.0
    %554 = vmatpush1.msra.mxu0 0.0
    %555 = vmatprep.subr.mxu0 0.0
    %556 = vmatpush1.msra.mxu0 0.0
    %557 = vmatprep.subr.mxu0 0.0
    %558 = vmatpush1.msra.mxu0 0.0
    %559 = vmatprep.subr.mxu0 0.0
    %560 = vmatpush1.msra.mxu0 0.0
    %561 = vmatprep.subr.mxu0 0.0
    %562 = vmatpush1.msra.mxu0 0.0
    %563 = vmatprep.subr.mxu0 0.0
    %564 = vmatpush1.msra.mxu0 0.0
    %565 = vmatprep.subr.mxu0 0.0
    %566 = vmatpush1.msra.mxu0 0.0
    %567 = vmatprep.subr.mxu0 0.0
    %568 = vmatpush1.msra.mxu0 0.0
    %569 = vmatprep.subr.mxu0 0.0
    %570 = vmatpush1.msra.mxu0 0.0
    %571 = vmatprep.subr.mxu0 0.0
    %572 = vmatpush1.msra.mxu0 0.0
    %573 = vmatprep.subr.mxu0 0.0
    %574 = vmatpush1.msra.mxu0 0.0
    %575 = vmatprep.subr.mxu0 0.0
    %576 = vmatpush1.msra.mxu0 0.0
    %577 = vmatprep.subr.mxu0 0.0
    %578 = vmatpush1.msra.mxu0 0.0
    %579 = vmatprep.subr.mxu0 0.0
    %580 = vmatpush1.msra.mxu0 0.0
    %581 = vmatprep.subr.mxu0 0.0
    %582 = vmatpush1.msra.mxu0 0.0
    %583 = vmatprep.subr.mxu0 0.0
    %584 = vmatpush1.msra.mxu0 0.0
    %585 = vmatprep.subr.mxu0 0.0
    %586 = vmatpush1.msra.mxu0 0.0
    %587 = vmatprep.subr.mxu0 0.0
    %588 = vmatpush1.msra.mxu0 0.0
    %589 = vmatprep.subr.mxu0 0.0
    %590 = vmatpush1.msra.mxu0 0.0
    %591 = vmatprep.subr.mxu0 0.0
    %592 = vmatpush1.msra.mxu0 0.0
    %593 = vmatprep.mubr.f32.mxu0 0.0
    %594 = vmatmul.mubr.f32.gmra.mrb[0].mxu0 %v527
    %v595 = vpop.f32.mrb[0].mxu0
    %v596 = vadd.f32 0.0, %v595
    %v597 = vpop.f32.mrb[0].mxu0
    %598 = vdwg.mxu0
    %v600 = vrot.slane %v596, 2
    %v602 = vadd.f32 %v285, %v600
    %v603 = vtanh.pop %v602
    %v605 = vrot.slane %v603, 6
    %v606 = vsel %vm211, %v605, 0
    %608 = vmatprep.subr.mxu0 0.0
    %609 = vmatpush1.msra.mxu0 %v199
    %610 = vmatprep.subr.mxu0 0.0
    %611 = vmatpush1.msra.mxu0 %v200
    %612 = vmatprep.subr.mxu0 0.0
    %613 = vmatpush1.msra.mxu0 %v201
    %614 = vmatprep.subr.mxu0 0.0
    %615 = vmatpush1.msra.mxu0 %v202
    %616 = vmatprep.subr.mxu0 0.0
    %617 = vmatpush1.msra.mxu0 0.0
    %618 = vmatprep.subr.mxu0 0.0
    %619 = vmatpush1.msra.mxu0 0.0
    %620 = vmatprep.subr.mxu0 0.0
    %621 = vmatpush1.msra.mxu0 0.0
    %622 = vmatprep.subr.mxu0 0.0
    %623 = vmatpush1.msra.mxu0 0.0
    %624 = vmatprep.subr.mxu0 0.0
    %625 = vmatpush1.msra.mxu0 0.0
    %626 = vmatprep.subr.mxu0 0.0
    %627 = vmatpush1.msra.mxu0 0.0
    %628 = vmatprep.subr.mxu0 0.0
    %629 = vmatpush1.msra.mxu0 0.0
    %630 = vmatprep.subr.mxu0 0.0
    %631 = vmatpush1.msra.mxu0 0.0
    %632 = vmatprep.subr.mxu0 0.0
    %633 = vmatpush1.msra.mxu0 0.0
    %634 = vmatprep.subr.mxu0 0.0
    %635 = vmatpush1.msra.mxu0 0.0
    %636 = vmatprep.subr.mxu0 0.0
    %637 = vmatpush1.msra.mxu0 0.0
    %638 = vmatprep.subr.mxu0 0.0
    %639 = vmatpush1.msra.mxu0 0.0
    %640 = vmatprep.subr.mxu0 0.0
    %641 = vmatpush1.msra.mxu0 0.0
    %642 = vmatprep.subr.mxu0 0.0
    %643 = vmatpush1.msra.mxu0 0.0
    %644 = vmatprep.subr.mxu0 0.0
    %645 = vmatpush1.msra.mxu0 0.0
    %646 = vmatprep.subr.mxu0 0.0
    %647 = vmatpush1.msra.mxu0 0.0
    %648 = vmatprep.subr.mxu0 0.0
    %649 = vmatpush1.msra.mxu0 0.0
    %650 = vmatprep.subr.mxu0 0.0
    %651 = vmatpush1.msra.mxu0 0.0
    %652 = vmatprep.subr.mxu0 0.0
    %653 = vmatpush1.msra.mxu0 0.0
    %654 = vmatprep.subr.mxu0 0.0
    %655 = vmatpush1.msra.mxu0 0.0
    %656 = vmatprep.subr.mxu0 0.0
    %657 = vmatpush1.msra.mxu0 0.0
    %658 = vmatprep.subr.mxu0 0.0
    %659 = vmatpush1.msra.mxu0 0.0
    %660 = vmatprep.subr.mxu0 0.0
    %661 = vmatpush1.msra.mxu0 0.0
    %662 = vmatprep.subr.mxu0 0.0
    %663 = vmatpush1.msra.mxu0 0.0
    %664 = vmatprep.subr.mxu0 0.0
    %665 = vmatpush1.msra.mxu0 0.0
    %666 = vmatprep.subr.mxu0 0.0
    %667 = vmatpush1.msra.mxu0 0.0
    %668 = vmatprep.subr.mxu0 0.0
    %669 = vmatpush1.msra.mxu0 0.0
    %670 = vmatprep.subr.mxu0 0.0
    %671 = vmatpush1.msra.mxu0 0.0
    %672 = vmatprep.mubr.f32.mxu0 0.0
    %673 = vmatmul.mubr.f32.gmra.mrb[0].mxu0 %v606
    %v674 = vpop.f32.mrb[0].mxu0
    %v675 = vadd.f32 0.0, %v674
    %v676 = vpop.f32.mrb[0].mxu0
    %677 = vdwg.mxu0
    %v678 = vadd.f32 %v290, %v675
    %v679 = vtanh.pop %v678
    %v681 = vsel %vm211, %v679, 0
    %683 = vmatprep.subr.mxu0 0.0
    %684 = vmatpush1.msra.mxu0 %v199
    %685 = vmatprep.subr.mxu0 0.0
    %686 = vmatpush1.msra.mxu0 %v200
    %687 = vmatprep.subr.mxu0 0.0
    %688 = vmatpush1.msra.mxu0 %v201
    %689 = vmatprep.subr.mxu0 0.0
    %690 = vmatpush1.msra.mxu0 %v202
    %691 = vmatprep.subr.mxu0 0.0
    %692 = vmatpush1.msra.mxu0 0.0
    %693 = vmatprep.subr.mxu0 0.0
    %694 = vmatpush1.msra.mxu0 0.0
    %695 = vmatprep.subr.mxu0 0.0
    %696 = vmatpush1.msra.mxu0 0.0
    %697 = vmatprep.subr.mxu0 0.0
    %698 = vmatpush1.msra.mxu0 0.0
    %699 = vmatprep.subr.mxu0 0.0
    %700 = vmatpush1.msra.mxu0 0.0
    %701 = vmatprep.subr.mxu0 0.0
    %702 = vmatpush1.msra.mxu0 0.0
    %703 = vmatprep.subr.mxu0 0.0
    %704 = vmatpush1.msra.mxu0 0.0
    %705 = vmatprep.subr.mxu0 0.0
    %706 = vmatpush1.msra.mxu0 0.0
    %707 = vmatprep.subr.mxu0 0.0
    %708 = vmatpush1.msra.mxu0 0.0
    %709 = vmatprep.subr.mxu0 0.0
    %710 = vmatpush1.msra.mxu0 0.0
    %711 = vmatprep.subr.mxu0 0.0
    %712 = vmatpush1.msra.mxu0 0.0
    %713 = vmatprep.subr.mxu0 0.0
    %714 = vmatpush1.msra.mxu0 0.0
    %715 = vmatprep.subr.mxu0 0.0
    %716 = vmatpush1.msra.mxu0 0.0
    %717 = vmatprep.subr.mxu0 0.0
    %718 = vmatpush1.msra.mxu0 0.0
    %719 = vmatprep.subr.mxu0 0.0
    %720 = vmatpush1.msra.mxu0 0.0
    %721 = vmatprep.subr.mxu0 0.0
    %722 = vmatpush1.msra.mxu0 0.0
    %723 = vmatprep.subr.mxu0 0.0
    %724 = vmatpush1.msra.mxu0 0.0
    %725 = vmatprep.subr.mxu0 0.0
    %726 = vmatpush1.msra.mxu0 0.0
    %727 = vmatprep.subr.mxu0 0.0
    %728 = vmatpush1.msra.mxu0 0.0
    %729 = vmatprep.subr.mxu0 0.0
    %730 = vmatpush1.msra.mxu0 0.0
    %731 = vmatprep.subr.mxu0 0.0
    %732 = vmatpush1.msra.mxu0 0.0
    %733 = vmatprep.subr.mxu0 0.0
    %734 = vmatpush1.msra.mxu0 0.0
    %735 = vmatprep.subr.mxu0 0.0
    %736 = vmatpush1.msra.mxu0 0.0
    %737 = vmatprep.subr.mxu0 0.0
    %738 = vmatpush1.msra.mxu0 0.0
    %739 = vmatprep.subr.mxu0 0.0
    %740 = vmatpush1.msra.mxu0 0.0
    %741 = vmatprep.subr.mxu0 0.0
    %742 = vmatpush1.msra.mxu0 0.0
    %743 = vmatprep.subr.mxu0 0.0
    %744 = vmatpush1.msra.mxu0 0.0
    %745 = vmatprep.subr.mxu0 0.0
    %746 = vmatpush1.msra.mxu0 0.0
    %747 = vmatprep.mubr.f32.mxu0 0.0
    %748 = vmatmul.mubr.f32.gmra.mrb[0].mxu0 %v681
    %v749 = vpop.f32.mrb[0].mxu0
    %v750 = vadd.f32 0.0, %v749
    %v751 = vpop.f32.mrb[0].mxu0
    %752 = vdwg.mxu0
    %v754 = vrot.slane %v750, 6
    %v756 = vadd.f32 %v290, %v754
    %v757 = vtanh.pop %v756
    %v759 = vrot.slane %v757, 2
    %v760 = vsel %vm211, %v759, 0
    %762 = vmatprep.subr.mxu0 0.0
    %763 = vmatpush1.msra.mxu0 %v199
    %764 = vmatprep.subr.mxu0 0.0
    %765 = vmatpush1.msra.mxu0 %v200
    %766 = vmatprep.subr.mxu0 0.0
    %767 = vmatpush1.msra.mxu0 %v201
    %768 = vmatprep.subr.mxu0 0.0
    %769 = vmatpush1.msra.mxu0 %v202
    %770 = vmatprep.subr.mxu0 0.0
    %771 = vmatpush1.msra.mxu0 0.0
    %772 = vmatprep.subr.mxu0 0.0
    %773 = vmatpush1.msra.mxu0 0.0
    %774 = vmatprep.subr.mxu0 0.0
    %775 = vmatpush1.msra.mxu0 0.0
    %776 = vmatprep.subr.mxu0 0.0
    %777 = vmatpush1.msra.mxu0 0.0
    %778 = vmatprep.subr.mxu0 0.0
    %779 = vmatpush1.msra.mxu0 0.0
    %780 = vmatprep.subr.mxu0 0.0
    %781 = vmatpush1.msra.mxu0 0.0
    %782 = vmatprep.subr.mxu0 0.0
    %783 = vmatpush1.msra.mxu0 0.0
    %784 = vmatprep.subr.mxu0 0.0
    %785 = vmatpush1.msra.mxu0 0.0
    %786 = vmatprep.subr.mxu0 0.0
    %787 = vmatpush1.msra.mxu0 0.0
    %788 = vmatprep.subr.mxu0 0.0
    %789 = vmatpush1.msra.mxu0 0.0
    %790 = vmatprep.subr.mxu0 0.0
    %791 = vmatpush1.msra.mxu0 0.0
    %792 = vmatprep.subr.mxu0 0.0
    %793 = vmatpush1.msra.mxu0 0.0
    %794 = vmatprep.subr.mxu0 0.0
    %795 = vmatpush1.msra.mxu0 0.0
    %796 = vmatprep.subr.mxu0 0.0
    %797 = vmatpush1.msra.mxu0 0.0
    %798 = vmatprep.subr.mxu0 0.0
    %799 = vmatpush1.msra.mxu0 0.0
    %800 = vmatprep.subr.mxu0 0.0
    %801 = vmatpush1.msra.mxu0 0.0
    %802 = vmatprep.subr.mxu0 0.0
    %803 = vmatpush1.msra.mxu0 0.0
    %804 = vmatprep.subr.mxu0 0.0
    %805 = vmatpush1.msra.mxu0 0.0
    %806 = vmatprep.subr.mxu0 0.0
    %807 = vmatpush1.msra.mxu0 0.0
    %808 = vmatprep.subr.mxu0 0.0
    %809 = vmatpush1.msra.mxu0 0.0
    %810 = vmatprep.subr.mxu0 0.0
    %811 = vmatpush1.msra.mxu0 0.0
    %812 = vmatprep.subr.mxu0 0.0
    %813 = vmatpush1.msra.mxu0 0.0
    %814 = vmatprep.subr.mxu0 0.0
    %815 = vmatpush1.msra.mxu0 0.0
    %816 = vmatprep.subr.mxu0 0.0
    %817 = vmatpush1.msra.mxu0 0.0
    %818 = vmatprep.subr.mxu0 0.0
    %819 = vmatpush1.msra.mxu0 0.0
    %820 = vmatprep.subr.mxu0 0.0
    %821 = vmatpush1.msra.mxu0 0.0
    %822 = vmatprep.subr.mxu0 0.0
    %823 = vmatpush1.msra.mxu0 0.0
    %824 = vmatprep.subr.mxu0 0.0
    %825 = vmatpush1.msra.mxu0 0.0
    %826 = vmatprep.mubr.f32.mxu0 0.0
    %827 = vmatmul.mubr.f32.gmra.mrb[0].mxu0 %v760
    %v828 = vpop.f32.mrb[0].mxu0
    %v829 = vadd.f32 0.0, %v828
    %v830 = vpop.f32.mrb[0].mxu0
    %831 = vdwg.mxu0
    %v833 = vrot.slane %v829, 4
    %v835 = vadd.f32 %v290, %v833
    %v836 = vtanh.pop %v835
    %v838 = vrot.slane %v836, 4
    %v839 = vsel %vm211, %v838, 0
    %841 = vmatprep.subr.mxu0 0.0
    %842 = vmatpush1.msra.mxu0 %v199
    %843 = vmatprep.subr.mxu0 0.0
    %844 = vmatpush1.msra.mxu0 %v200
    %845 = vmatprep.subr.mxu0 0.0
    %846 = vmatpush1.msra.mxu0 %v201
    %847 = vmatprep.subr.mxu0 0.0
    %848 = vmatpush1.msra.mxu0 %v202
    %849 = vmatprep.subr.mxu0 0.0
    %850 = vmatpush1.msra.mxu0 0.0
    %851 = vmatprep.subr.mxu0 0.0
    %852 = vmatpush1.msra.mxu0 0.0
    %853 = vmatprep.subr.mxu0 0.0
    %854 = vmatpush1.msra.mxu0 0.0
    %855 = vmatprep.subr.mxu0 0.0
    %856 = vmatpush1.msra.mxu0 0.0
    %857 = vmatprep.subr.mxu0 0.0
    %858 = vmatpush1.msra.mxu0 0.0
    %859 = vmatprep.subr.mxu0 0.0
    %860 = vmatpush1.msra.mxu0 0.0
    %861 = vmatprep.subr.mxu0 0.0
    %862 = vmatpush1.msra.mxu0 0.0
    %863 = vmatprep.subr.mxu0 0.0
    %864 = vmatpush1.msra.mxu0 0.0
    %865 = vmatprep.subr.mxu0 0.0
    %866 = vmatpush1.msra.mxu0 0.0
    %867 = vmatprep.subr.mxu0 0.0
    %868 = vmatpush1.msra.mxu0 0.0
    %869 = vmatprep.subr.mxu0 0.0
    %870 = vmatpush1.msra.mxu0 0.0
    %871 = vmatprep.subr.mxu0 0.0
    %872 = vmatpush1.msra.mxu0 0.0
    %873 = vmatprep.subr.mxu0 0.0
    %874 = vmatpush1.msra.mxu0 0.0
    %875 = vmatprep.subr.mxu0 0.0
    %876 = vmatpush1.msra.mxu0 0.0
    %877 = vmatprep.subr.mxu0 0.0
    %878 = vmatpush1.msra.mxu0 0.0
    %879 = vmatprep.subr.mxu0 0.0
    %880 = vmatpush1.msra.mxu0 0.0
    %881 = vmatprep.subr.mxu0 0.0
    %882 = vmatpush1.msra.mxu0 0.0
    %883 = vmatprep.subr.mxu0 0.0
    %884 = vmatpush1.msra.mxu0 0.0
    %885 = vmatprep.subr.mxu0 0.0
    %886 = vmatpush1.msra.mxu0 0.0
    %887 = vmatprep.subr.mxu0 0.0
    %888 = vmatpush1.msra.mxu0 0.0
    %889 = vmatprep.subr.mxu0 0.0
    %890 = vmatpush1.msra.mxu0 0.0
    %891 = vmatprep.subr.mxu0 0.0
    %892 = vmatpush1.msra.mxu0 0.0
    %893 = vmatprep.subr.mxu0 0.0
    %894 = vmatpush1.msra.mxu0 0.0
    %895 = vmatprep.subr.mxu0 0.0
    %896 = vmatpush1.msra.mxu0 0.0
    %897 = vmatprep.subr.mxu0 0.0
    %898 = vmatpush1.msra.mxu0 0.0
    %899 = vmatprep.subr.mxu0 0.0
    %900 = vmatpush1.msra.mxu0 0.0
    %901 = vmatprep.subr.mxu0 0.0
    %902 = vmatpush1.msra.mxu0 0.0
    %903 = vmatprep.subr.mxu0 0.0
    %904 = vmatpush1.msra.mxu0 0.0
    %905 = vmatprep.mubr.f32.mxu0 0.0
    %906 = vmatmul.mubr.f32.gmra.mrb[0].mxu0 %v839
    %v907 = vpop.f32.mrb[0].mxu0
    %v908 = vadd.f32 0.0, %v907
    %v909 = vpop.f32.mrb[0].mxu0
    %910 = vdwg.mxu0
    %v912 = vrot.slane %v908, 2
    %v914 = vadd.f32 %v290, %v912
    %v915 = vtanh.pop %v914
    %vm916 = vcmask 261126
    %917 = vst.msk [vmem:[#allocation10 - $0x6] sm:$0xc0] %vm916, %v915
    %v918 = vld [vmem:[#allocation7] sm:$0xff]
    %v919 = vld [vmem:[#allocation7 + $0x8] sm:$0xff]
    %v920 = vld [vmem:[#allocation7 + $0x10] sm:$0xff]
    %v921 = vld [vmem:[#allocation7 + $0x18] sm:$0xff]
    %v922 = vld [vmem:[#allocation8] sm:$0xff]
    %v923 = vld [vmem:[#allocation8 + $0x8] sm:$0xff]
    %v924 = vld [vmem:[#allocation8 + $0x10] sm:$0xff]
    %v925 = vld [vmem:[#allocation8 + $0x18] sm:$0xff]
    %v926 = vld [vmem:[%s8] sm:$0x1]
    %s927 = scalar_lea.vmem %s2, 2
    %v928 = vld [vmem:[%s927] sm:$0x3]
    %v930 = vlaneseq
    %v931 = vshrl.u32 %v930, 7
    %v932 = vsub.s32 0, %v931
    %v933 = vrot.slane %v926, %v932
    %935 = vmatprep.subr.mxu0 0.0
    %936 = vmatpush1.msra.mxu0 %v918
    %937 = vmatprep.subr.mxu0 0.0
    %938 = vmatpush1.msra.mxu0 %v919
    %939 = vmatprep.subr.mxu0 0.0
    %940 = vmatpush1.msra.mxu0 %v920
    %941 = vmatprep.subr.mxu0 0.0
    %942 = vmatpush1.msra.mxu0 %v921
    %943 = vmatprep.subr.mxu0 0.0
    %944 = vmatpush1.msra.mxu0 0.0
    %945 = vmatprep.subr.mxu0 0.0
    %946 = vmatpush1.msra.mxu0 0.0
    %947 = vmatprep.subr.mxu0 0.0
    %948 = vmatpush1.msra.mxu0 0.0
    %949 = vmatprep.subr.mxu0 0.0
    %950 = vmatpush1.msra.mxu0 0.0
    %951 = vmatprep.subr.mxu0 0.0
    %952 = vmatpush1.msra.mxu0 0.0
    %953 = vmatprep.subr.mxu0 0.0
    %954 = vmatpush1.msra.mxu0 0.0
    %955 = vmatprep.subr.mxu0 0.0
    %956 = vmatpush1.msra.mxu0 0.0
    %957 = vmatprep.subr.mxu0 0.0
    %958 = vmatpush1.msra.mxu0 0.0
    %959 = vmatprep.subr.mxu0 0.0
    %960 = vmatpush1.msra.mxu0 0.0
    %961 = vmatprep.subr.mxu0 0.0
    %962 = vmatpush1.msra.mxu0 0.0
    %963 = vmatprep.subr.mxu0 0.0
    %964 = vmatpush1.msra.mxu0 0.0
    %965 = vmatprep.subr.mxu0 0.0
    %966 = vmatpush1.msra.mxu0 0.0
    %967 = vmatprep.subr.mxu0 0.0
    %968 = vmatpush1.msra.mxu0 0.0
    %969 = vmatprep.subr.mxu0 0.0
    %970 = vmatpush1.msra.mxu0 0.0
    %971 = vmatprep.subr.mxu0 0.0
    %972 = vmatpush1.msra.mxu0 0.0
    %973 = vmatprep.subr.mxu0 0.0
    %974 = vmatpush1.msra.mxu0 0.0
    %975 = vmatprep.subr.mxu0 0.0
    %976 = vmatpush1.msra.mxu0 0.0
    %977 = vmatprep.subr.mxu0 0.0
    %978 = vmatpush1.msra.mxu0 0.0
    %979 = vmatprep.subr.mxu0 0.0
    %980 = vmatpush1.msra.mxu0 0.0
    %981 = vmatprep.subr.mxu0 0.0
    %982 = vmatpush1.msra.mxu0 0.0
    %983 = vmatprep.subr.mxu0 0.0
    %984 = vmatpush1.msra.mxu0 0.0
    %985 = vmatprep.subr.mxu0 0.0
    %986 = vmatpush1.msra.mxu0 0.0
    %987 = vmatprep.subr.mxu0 0.0
    %988 = vmatpush1.msra.mxu0 0.0
    %989 = vmatprep.subr.mxu0 0.0
    %990 = vmatpush1.msra.mxu0 0.0
    %991 = vmatprep.subr.mxu0 0.0
    %992 = vmatpush1.msra.mxu0 0.0
    %993 = vmatprep.subr.mxu0 0.0
    %994 = vmatpush1.msra.mxu0 0.0
    %995 = vmatprep.subr.mxu0 0.0
    %996 = vmatpush1.msra.mxu0 0.0
    %997 = vmatprep.subr.mxu0 0.0
    %998 = vmatpush1.msra.mxu0 0.0
    %999 = vmatprep.mubr.f32.mxu0 0.0
    %1000 = vmatmul.mubr.f32.gmra.mrb[0].mxu0 %v369
    %v1001 = vpop.f32.mrb[0].mxu0
    %v1002 = vadd.f32 %v933, %v1001
    %v1003 = vpop.f32.mrb[0].mxu0
    %1004 = vdwg.mxu0
    %v1006 = vsel %vm211, %v928, 0
    %1008 = vmatprep.subr.mxu0 0.0
    %1009 = vmatpush1.msra.mxu0 %v922
    %1010 = vmatprep.subr.mxu0 0.0
    %1011 = vmatpush1.msra.mxu0 %v923
    %1012 = vmatprep.subr.mxu0 0.0
    %1013 = vmatpush1.msra.mxu0 %v924
    %1014 = vmatprep.subr.mxu0 0.0
    %1015 = vmatpush1.msra.mxu0 %v925
    %1016 = vmatprep.subr.mxu0 0.0
    %1017 = vmatpush1.msra.mxu0 0.0
    %1018 = vmatprep.subr.mxu0 0.0
    %1019 = vmatpush1.msra.mxu0 0.0
    %1020 = vmatprep.subr.mxu0 0.0
    %1021 = vmatpush1.msra.mxu0 0.0
    %1022 = vmatprep.subr.mxu0 0.0
    %1023 = vmatpush1.msra.mxu0 0.0
    %1024 = vmatprep.subr.mxu0 0.0
    %1025 = vmatpush1.msra.mxu0 0.0
    %1026 = vmatprep.subr.mxu0 0.0
    %1027 = vmatpush1.msra.mxu0 0.0
    %1028 = vmatprep.subr.mxu0 0.0
    %1029 = vmatpush1.msra.mxu0 0.0
    %1030 = vmatprep.subr.mxu0 0.0
    %1031 = vmatpush1.msra.mxu0 0.0
    %1032 = vmatprep.subr.mxu0 0.0
    %1033 = vmatpush1.msra.mxu0 0.0
    %1034 = vmatprep.subr.mxu0 0.0
    %1035 = vmatpush1.msra.mxu0 0.0
    %1036 = vmatprep.subr.mxu0 0.0
    %1037 = vmatpush1.msra.mxu0 0.0
    %1038 = vmatprep.subr.mxu0 0.0
    %1039 = vmatpush1.msra.mxu0 0.0
    %1040 = vmatprep.subr.mxu0 0.0
    %1041 = vmatpush1.msra.mxu0 0.0
    %1042 = vmatprep.subr.mxu0 0.0
    %1043 = vmatpush1.msra.mxu0 0.0
    %1044 = vmatprep.subr.mxu0 0.0
    %1045 = vmatpush1.msra.mxu0 0.0
    %1046 = vmatprep.subr.mxu0 0.0
    %1047 = vmatpush1.msra.mxu0 0.0
    %1048 = vmatprep.subr.mxu0 0.0
    %1049 = vmatpush1.msra.mxu0 0.0
    %1050 = vmatprep.subr.mxu0 0.0
    %1051 = vmatpush1.msra.mxu0 0.0
    %1052 = vmatprep.subr.mxu0 0.0
    %1053 = vmatpush1.msra.mxu0 0.0
    %1054 = vmatprep.subr.mxu0 0.0
    %1055 = vmatpush1.msra.mxu0 0.0
    %1056 = vmatprep.subr.mxu0 0.0
    %1057 = vmatpush1.msra.mxu0 0.0
    %1058 = vmatprep.subr.mxu0 0.0
    %1059 = vmatpush1.msra.mxu0 0.0
    %1060 = vmatprep.subr.mxu0 0.0
    %1061 = vmatpush1.msra.mxu0 0.0
    %1062 = vmatprep.subr.mxu0 0.0
    %1063 = vmatpush1.msra.mxu0 0.0
    %1064 = vmatprep.subr.mxu0 0.0
    %1065 = vmatpush1.msra.mxu0 0.0
    %1066 = vmatprep.subr.mxu0 0.0
    %1067 = vmatpush1.msra.mxu0 0.0
    %1068 = vmatprep.subr.mxu0 0.0
    %1069 = vmatpush1.msra.mxu0 0.0
    %1070 = vmatprep.subr.mxu0 0.0
    %1071 = vmatpush1.msra.mxu0 0.0
    %1072 = vmatprep.mubr.f32.mxu0 0.0
    %1073 = vmatmul.mubr.f32.gmra.mrb[0].mxu0 %v1006
    %v1074 = vpop.f32.mrb[0].mxu0
    %v1075 = vadd.f32 0.0, %v1074
    %v1076 = vpop.f32.mrb[0].mxu0
    %1077 = vdwg.mxu0
    %v1078 = vadd.f32 %v1002, %v1075
    %v1079 = vtanh.pop %v1078
    %1080 = vmatprep.subr.mxu0 0.0
    %1081 = vmatpush1.msra.mxu0 %v918
    %1082 = vmatprep.subr.mxu0 0.0
    %1083 = vmatpush1.msra.mxu0 %v919
    %1084 = vmatprep.subr.mxu0 0.0
    %1085 = vmatpush1.msra.mxu0 %v920
    %1086 = vmatprep.subr.mxu0 0.0
    %1087 = vmatpush1.msra.mxu0 %v921
    %1088 = vmatprep.subr.mxu0 0.0
    %1089 = vmatpush1.msra.mxu0 0.0
    %1090 = vmatprep.subr.mxu0 0.0
    %1091 = vmatpush1.msra.mxu0 0.0
    %1092 = vmatprep.subr.mxu0 0.0
    %1093 = vmatpush1.msra.mxu0 0.0
    %1094 = vmatprep.subr.mxu0 0.0
    %1095 = vmatpush1.msra.mxu0 0.0
    %1096 = vmatprep.subr.mxu0 0.0
    %1097 = vmatpush1.msra.mxu0 0.0
    %1098 = vmatprep.subr.mxu0 0.0
    %1099 = vmatpush1.msra.mxu0 0.0
    %1100 = vmatprep.subr.mxu0 0.0
    %1101 = vmatpush1.msra.mxu0 0.0
    %1102 = vmatprep.subr.mxu0 0.0
    %1103 = vmatpush1.msra.mxu0 0.0
    %1104 = vmatprep.subr.mxu0 0.0
    %1105 = vmatpush1.msra.mxu0 0.0
    %1106 = vmatprep.subr.mxu0 0.0
    %1107 = vmatpush1.msra.mxu0 0.0
    %1108 = vmatprep.subr.mxu0 0.0
    %1109 = vmatpush1.msra.mxu0 0.0
    %1110 = vmatprep.subr.mxu0 0.0
    %1111 = vmatpush1.msra.mxu0 0.0
    %1112 = vmatprep.subr.mxu0 0.0
    %1113 = vmatpush1.msra.mxu0 0.0
    %1114 = vmatprep.subr.mxu0 0.0
    %1115 = vmatpush1.msra.mxu0 0.0
    %1116 = vmatprep.subr.mxu0 0.0
    %1117 = vmatpush1.msra.mxu0 0.0
    %1118 = vmatprep.subr.mxu0 0.0
    %1119 = vmatpush1.msra.mxu0 0.0
    %1120 = vmatprep.subr.mxu0 0.0
    %1121 = vmatpush1.msra.mxu0 0.0
    %1122 = vmatprep.subr.mxu0 0.0
    %1123 = vmatpush1.msra.mxu0 0.0
    %1124 = vmatprep.subr.mxu0 0.0
    %1125 = vmatpush1.msra.mxu0 0.0
    %1126 = vmatprep.subr.mxu0 0.0
    %1127 = vmatpush1.msra.mxu0 0.0
    %1128 = vmatprep.subr.mxu0 0.0
    %1129 = vmatpush1.msra.mxu0 0.0
    %1130 = vmatprep.subr.mxu0 0.0
    %1131 = vmatpush1.msra.mxu0 0.0
    %1132 = vmatprep.subr.mxu0 0.0
    %1133 = vmatpush1.msra.mxu0 0.0
    %1134 = vmatprep.subr.mxu0 0.0
    %1135 = vmatpush1.msra.mxu0 0.0
    %1136 = vmatprep.subr.mxu0 0.0
    %1137 = vmatpush1.msra.mxu0 0.0
    %1138 = vmatprep.subr.mxu0 0.0
    %1139 = vmatpush1.msra.mxu0 0.0
    %1140 = vmatprep.subr.mxu0 0.0
    %1141 = vmatpush1.msra.mxu0 0.0
    %1142 = vmatprep.subr.mxu0 0.0
    %1143 = vmatpush1.msra.mxu0 0.0
    %1144 = vmatprep.mubr.f32.mxu0 0.0
    %1145 = vmatmul.mubr.f32.gmra.mrb[0].mxu0 %v448
    %v1146 = vpop.f32.mrb[0].mxu0
    %v1147 = vadd.f32 %v933, %v1146
    %v1148 = vpop.f32.mrb[0].mxu0
    %1149 = vdwg.mxu0
    %v1151 = vsel %vm211, %v1079, 0
    %1153 = vmatprep.subr.mxu0 0.0
    %1154 = vmatpush1.msra.mxu0 %v922
    %1155 = vmatprep.subr.mxu0 0.0
    %1156 = vmatpush1.msra.mxu0 %v923
    %1157 = vmatprep.subr.mxu0 0.0
    %1158 = vmatpush1.msra.mxu0 %v924
    %1159 = vmatprep.subr.mxu0 0.0
    %1160 = vmatpush1.msra.mxu0 %v925
    %1161 = vmatprep.subr.mxu0 0.0
    %1162 = vmatpush1.msra.mxu0 0.0
    %1163 = vmatprep.subr.mxu0 0.0
    %1164 = vmatpush1.msra.mxu0 0.0
    %1165 = vmatprep.subr.mxu0 0.0
    %1166 = vmatpush1.msra.mxu0 0.0
    %1167 = vmatprep.subr.mxu0 0.0
    %1168 = vmatpush1.msra.mxu0 0.0
    %1169 = vmatprep.subr.mxu0 0.0
    %1170 = vmatpush1.msra.mxu0 0.0
    %1171 = vmatprep.subr.mxu0 0.0
    %1172 = vmatpush1.msra.mxu0 0.0
    %1173 = vmatprep.subr.mxu0 0.0
    %1174 = vmatpush1.msra.mxu0 0.0
    %1175 = vmatprep.subr.mxu0 0.0
    %1176 = vmatpush1.msra.mxu0 0.0
    %1177 = vmatprep.subr.mxu0 0.0
    %1178 = vmatpush1.msra.mxu0 0.0
    %1179 = vmatprep.subr.mxu0 0.0
    %1180 = vmatpush1.msra.mxu0 0.0
    %1181 = vmatprep.subr.mxu0 0.0
    %1182 = vmatpush1.msra.mxu0 0.0
    %1183 = vmatprep.subr.mxu0 0.0
    %1184 = vmatpush1.msra.mxu0 0.0
    %1185 = vmatprep.subr.mxu0 0.0
    %1186 = vmatpush1.msra.mxu0 0.0
    %1187 = vmatprep.subr.mxu0 0.0
    %1188 = vmatpush1.msra.mxu0 0.0
    %1189 = vmatprep.subr.mxu0 0.0
    %1190 = vmatpush1.msra.mxu0 0.0
    %1191 = vmatprep.subr.mxu0 0.0
    %1192 = vmatpush1.msra.mxu0 0.0
    %1193 = vmatprep.subr.mxu0 0.0
    %1194 = vmatpush1.msra.mxu0 0.0
    %1195 = vmatprep.subr.mxu0 0.0
    %1196 = vmatpush1.msra.mxu0 0.0
    %1197 = vmatprep.subr.mxu0 0.0
    %1198 = vmatpush1.msra.mxu0 0.0
    %1199 = vmatprep.subr.mxu0 0.0
    %1200 = vmatpush1.msra.mxu0 0.0
    %1201 = vmatprep.subr.mxu0 0.0
    %1202 = vmatpush1.msra.mxu0 0.0
    %1203 = vmatprep.subr.mxu0 0.0
    %1204 = vmatpush1.msra.mxu0 0.0
    %1205 = vmatprep.subr.mxu0 0.0
    %1206 = vmatpush1.msra.mxu0 0.0
    %1207 = vmatprep.subr.mxu0 0.0
    %1208 = vmatpush1.msra.mxu0 0.0
    %1209 = vmatprep.subr.mxu0 0.0
    %1210 = vmatpush1.msra.mxu0 0.0
    %1211 = vmatprep.subr.mxu0 0.0
    %1212 = vmatpush1.msra.mxu0 0.0
    %1213 = vmatprep.subr.mxu0 0.0
    %1214 = vmatpush1.msra.mxu0 0.0
    %1215 = vmatprep.subr.mxu0 0.0
    %1216 = vmatpush1.msra.mxu0 0.0
    %1217 = vmatprep.mubr.f32.mxu0 0.0
    %1218 = vmatmul.mubr.f32.gmra.mrb[0].mxu0 %v1151
    %v1219 = vpop.f32.mrb[0].mxu0
    %v1220 = vadd.f32 0.0, %v1219
    %v1221 = vpop.f32.mrb[0].mxu0
    %1222 = vdwg.mxu0
    %v1223 = vadd.f32 %v1147, %v1220
    %v1224 = vtanh.pop %v1223
    %1225 = vmatprep.subr.mxu0 0.0
    %1226 = vmatpush1.msra.mxu0 %v918
    %1227 = vmatprep.subr.mxu0 0.0
    %1228 = vmatpush1.msra.mxu0 %v919
    %1229 = vmatprep.subr.mxu0 0.0
    %1230 = vmatpush1.msra.mxu0 %v920
    %1231 = vmatprep.subr.mxu0 0.0
    %1232 = vmatpush1.msra.mxu0 %v921
    %1233 = vmatprep.subr.mxu0 0.0
    %1234 = vmatpush1.msra.mxu0 0.0
    %1235 = vmatprep.subr.mxu0 0.0
    %1236 = vmatpush1.msra.mxu0 0.0
    %1237 = vmatprep.subr.mxu0 0.0
    %1238 = vmatpush1.msra.mxu0 0.0
    %1239 = vmatprep.subr.mxu0 0.0
    %1240 = vmatpush1.msra.mxu0 0.0
    %1241 = vmatprep.subr.mxu0 0.0
    %1242 = vmatpush1.msra.mxu0 0.0
    %1243 = vmatprep.subr.mxu0 0.0
    %1244 = vmatpush1.msra.mxu0 0.0
    %1245 = vmatprep.subr.mxu0 0.0
    %1246 = vmatpush1.msra.mxu0 0.0
    %1247 = vmatprep.subr.mxu0 0.0
    %1248 = vmatpush1.msra.mxu0 0.0
    %1249 = vmatprep.subr.mxu0 0.0
    %1250 = vmatpush1.msra.mxu0 0.0
    %1251 = vmatprep.subr.mxu0 0.0
    %1252 = vmatpush1.msra.mxu0 0.0
    %1253 = vmatprep.subr.mxu0 0.0
    %1254 = vmatpush1.msra.mxu0 0.0
    %1255 = vmatprep.subr.mxu0 0.0
    %1256 = vmatpush1.msra.mxu0 0.0
    %1257 = vmatprep.subr.mxu0 0.0
    %1258 = vmatpush1.msra.mxu0 0.0
    %1259 = vmatprep.subr.mxu0 0.0
    %1260 = vmatpush1.msra.mxu0 0.0
    %1261 = vmatprep.subr.mxu0 0.0
    %1262 = vmatpush1.msra.mxu0 0.0
    %1263 = vmatprep.subr.mxu0 0.0
    %1264 = vmatpush1.msra.mxu0 0.0
    %1265 = vmatprep.subr.mxu0 0.0
    %1266 = vmatpush1.msra.mxu0 0.0
    %1267 = vmatprep.subr.mxu0 0.0
    %1268 = vmatpush1.msra.mxu0 0.0
    %1269 = vmatprep.subr.mxu0 0.0
    %1270 = vmatpush1.msra.mxu0 0.0
    %1271 = vmatprep.subr.mxu0 0.0
    %1272 = vmatpush1.msra.mxu0 0.0
    %1273 = vmatprep.subr.mxu0 0.0
    %1274 = vmatpush1.msra.mxu0 0.0
    %1275 = vmatprep.subr.mxu0 0.0
    %1276 = vmatpush1.msra.mxu0 0.0
    %1277 = vmatprep.subr.mxu0 0.0
    %1278 = vmatpush1.msra.mxu0 0.0
    %1279 = vmatprep.subr.mxu0 0.0
    %1280 = vmatpush1.msra.mxu0 0.0
    %1281 = vmatprep.subr.mxu0 0.0
    %1282 = vmatpush1.msra.mxu0 0.0
    %1283 = vmatprep.subr.mxu0 0.0
    %1284 = vmatpush1.msra.mxu0 0.0
    %1285 = vmatprep.subr.mxu0 0.0
    %1286 = vmatpush1.msra.mxu0 0.0
    %1287 = vmatprep.subr.mxu0 0.0
    %1288 = vmatpush1.msra.mxu0 0.0
    %1289 = vmatprep.mubr.f32.mxu0 0.0
    %1290 = vmatmul.mubr.f32.gmra.mrb[0].mxu0 %v527
    %v1291 = vpop.f32.mrb[0].mxu0
    %v1292 = vadd.f32 %v933, %v1291
    %v1293 = vpop.f32.mrb[0].mxu0
    %1294 = vdwg.mxu0
    %v1296 = vsel %vm211, %v1224, 0
    %1298 = vmatprep.subr.mxu0 0.0
    %1299 = vmatpush1.msra.mxu0 %v922
    %1300 = vmatprep.subr.mxu0 0.0
    %1301 = vmatpush1.msra.mxu0 %v923
    %1302 = vmatprep.subr.mxu0 0.0
    %1303 = vmatpush1.msra.mxu0 %v924
    %1304 = vmatprep.subr.mxu0 0.0
    %1305 = vmatpush1.msra.mxu0 %v925
    %1306 = vmatprep.subr.mxu0 0.0
    %1307 = vmatpush1.msra.mxu0 0.0
    %1308 = vmatprep.subr.mxu0 0.0
    %1309 = vmatpush1.msra.mxu0 0.0
    %1310 = vmatprep.subr.mxu0 0.0
    %1311 = vmatpush1.msra.mxu0 0.0
    %1312 = vmatprep.subr.mxu0 0.0
    %1313 = vmatpush1.msra.mxu0 0.0
    %1314 = vmatprep.subr.mxu0 0.0
    %1315 = vmatpush1.msra.mxu0 0.0
    %1316 = vmatprep.subr.mxu0 0.0
    %1317 = vmatpush1.msra.mxu0 0.0
    %1318 = vmatprep.subr.mxu0 0.0
    %1319 = vmatpush1.msra.mxu0 0.0
    %1320 = vmatprep.subr.mxu0 0.0
    %1321 = vmatpush1.msra.mxu0 0.0
    %1322 = vmatprep.subr.mxu0 0.0
    %1323 = vmatpush1.msra.mxu0 0.0
    %1324 = vmatprep.subr.mxu0 0.0
    %1325 = vmatpush1.msra.mxu0 0.0
    %1326 = vmatprep.subr.mxu0 0.0
    %1327 = vmatpush1.msra.mxu0 0.0
    %1328 = vmatprep.subr.mxu0 0.0
    %1329 = vmatpush1.msra.mxu0 0.0
    %1330 = vmatprep.subr.mxu0 0.0
    %1331 = vmatpush1.msra.mxu0 0.0
    %1332 = vmatprep.subr.mxu0 0.0
    %1333 = vmatpush1.msra.mxu0 0.0
    %1334 = vmatprep.subr.mxu0 0.0
    %1335 = vmatpush1.msra.mxu0 0.0
    %1336 = vmatprep.subr.mxu0 0.0
    %1337 = vmatpush1.msra.mxu0 0.0
    %1338 = vmatprep.subr.mxu0 0.0
    %1339 = vmatpush1.msra.mxu0 0.0
    %1340 = vmatprep.subr.mxu0 0.0
    %1341 = vmatpush1.msra.mxu0 0.0
    %1342 = vmatprep.subr.mxu0 0.0
    %1343 = vmatpush1.msra.mxu0 0.0
    %1344 = vmatprep.subr.mxu0 0.0
    %1345 = vmatpush1.msra.mxu0 0.0
    %1346 = vmatprep.subr.mxu0 0.0
    %1347 = vmatpush1.msra.mxu0 0.0
    %1348 = vmatprep.subr.mxu0 0.0
    %1349 = vmatpush1.msra.mxu0 0.0
    %1350 = vmatprep.subr.mxu0 0.0
    %1351 = vmatpush1.msra.mxu0 0.0
    %1352 = vmatprep.subr.mxu0 0.0
    %1353 = vmatpush1.msra.mxu0 0.0
    %1354 = vmatprep.subr.mxu0 0.0
    %1355 = vmatpush1.msra.mxu0 0.0
    %1356 = vmatprep.subr.mxu0 0.0
    %1357 = vmatpush1.msra.mxu0 0.0
    %1358 = vmatprep.subr.mxu0 0.0
    %1359 = vmatpush1.msra.mxu0 0.0
    %1360 = vmatprep.subr.mxu0 0.0
    %1361 = vmatpush1.msra.mxu0 0.0
    %1362 = vmatprep.mubr.f32.mxu0 0.0
    %1363 = vmatmul.mubr.f32.gmra.mrb[0].mxu0 %v1296
    %v1364 = vpop.f32.mrb[0].mxu0
    %v1365 = vadd.f32 0.0, %v1364
    %v1366 = vpop.f32.mrb[0].mxu0
    %1367 = vdwg.mxu0
    %v1368 = vadd.f32 %v1292, %v1365
    %v1369 = vtanh.pop %v1368
    %1370 = vmatprep.subr.mxu0 0.0
    %1371 = vmatpush1.msra.mxu0 %v918
    %1372 = vmatprep.subr.mxu0 0.0
    %1373 = vmatpush1.msra.mxu0 %v919
    %1374 = vmatprep.subr.mxu0 0.0
    %1375 = vmatpush1.msra.mxu0 %v920
    %1376 = vmatprep.subr.mxu0 0.0
    %1377 = vmatpush1.msra.mxu0 %v921
    %1378 = vmatprep.subr.mxu0 0.0
    %1379 = vmatpush1.msra.mxu0 0.0
    %1380 = vmatprep.subr.mxu0 0.0
    %1381 = vmatpush1.msra.mxu0 0.0
    %1382 = vmatprep.subr.mxu0 0.0
    %1383 = vmatpush1.msra.mxu0 0.0
    %1384 = vmatprep.subr.mxu0 0.0
    %1385 = vmatpush1.msra.mxu0 0.0
    %1386 = vmatprep.subr.mxu0 0.0
    %1387 = vmatpush1.msra.mxu0 0.0
    %1388 = vmatprep.subr.mxu0 0.0
    %1389 = vmatpush1.msra.mxu0 0.0
    %1390 = vmatprep.subr.mxu0 0.0
    %1391 = vmatpush1.msra.mxu0 0.0
    %1392 = vmatprep.subr.mxu0 0.0
    %1393 = vmatpush1.msra.mxu0 0.0
    %1394 = vmatprep.subr.mxu0 0.0
    %1395 = vmatpush1.msra.mxu0 0.0
    %1396 = vmatprep.subr.mxu0 0.0
    %1397 = vmatpush1.msra.mxu0 0.0
    %1398 = vmatprep.subr.mxu0 0.0
    %1399 = vmatpush1.msra.mxu0 0.0
    %1400 = vmatprep.subr.mxu0 0.0
    %1401 = vmatpush1.msra.mxu0 0.0
    %1402 = vmatprep.subr.mxu0 0.0
    %1403 = vmatpush1.msra.mxu0 0.0
    %1404 = vmatprep.subr.mxu0 0.0
    %1405 = vmatpush1.msra.mxu0 0.0
    %1406 = vmatprep.subr.mxu0 0.0
    %1407 = vmatpush1.msra.mxu0 0.0
    %1408 = vmatprep.subr.mxu0 0.0
    %1409 = vmatpush1.msra.mxu0 0.0
    %1410 = vmatprep.subr.mxu0 0.0
    %1411 = vmatpush1.msra.mxu0 0.0
    %1412 = vmatprep.subr.mxu0 0.0
    %1413 = vmatpush1.msra.mxu0 0.0
    %1414 = vmatprep.subr.mxu0 0.0
    %1415 = vmatpush1.msra.mxu0 0.0
    %1416 = vmatprep.subr.mxu0 0.0
    %1417 = vmatpush1.msra.mxu0 0.0
    %1418 = vmatprep.subr.mxu0 0.0
    %1419 = vmatpush1.msra.mxu0 0.0
    %1420 = vmatprep.subr.mxu0 0.0
    %1421 = vmatpush1.msra.mxu0 0.0
    %1422 = vmatprep.subr.mxu0 0.0
    %1423 = vmatpush1.msra.mxu0 0.0
    %1424 = vmatprep.subr.mxu0 0.0
    %1425 = vmatpush1.msra.mxu0 0.0
    %1426 = vmatprep.subr.mxu0 0.0
    %1427 = vmatpush1.msra.mxu0 0.0
    %1428 = vmatprep.subr.mxu0 0.0
    %1429 = vmatpush1.msra.mxu0 0.0
    %1430 = vmatprep.subr.mxu0 0.0
    %1431 = vmatpush1.msra.mxu0 0.0
    %1432 = vmatprep.subr.mxu0 0.0
    %1433 = vmatpush1.msra.mxu0 0.0
    %1434 = vmatprep.mubr.f32.mxu0 0.0
    %1435 = vmatmul.mubr.f32.gmra.mrb[0].mxu0 %v606
    %v1436 = vpop.f32.mrb[0].mxu0
    %v1437 = vadd.f32 %v933, %v1436
    %v1438 = vpop.f32.mrb[0].mxu0
    %1439 = vdwg.mxu0
    %v1441 = vsel %vm211, %v1369, 0
    %1443 = vmatprep.subr.mxu0 0.0
    %1444 = vmatpush1.msra.mxu0 %v922
    %1445 = vmatprep.subr.mxu0 0.0
    %1446 = vmatpush1.msra.mxu0 %v923
    %1447 = vmatprep.subr.mxu0 0.0
    %1448 = vmatpush1.msra.mxu0 %v924
    %1449 = vmatprep.subr.mxu0 0.0
    %1450 = vmatpush1.msra.mxu0 %v925
    %1451 = vmatprep.subr.mxu0 0.0
    %1452 = vmatpush1.msra.mxu0 0.0
    %1453 = vmatprep.subr.mxu0 0.0
    %1454 = vmatpush1.msra.mxu0 0.0
    %1455 = vmatprep.subr.mxu0 0.0
    %1456 = vmatpush1.msra.mxu0 0.0
    %1457 = vmatprep.subr.mxu0 0.0
    %1458 = vmatpush1.msra.mxu0 0.0
    %1459 = vmatprep.subr.mxu0 0.0
    %1460 = vmatpush1.msra.mxu0 0.0
    %1461 = vmatprep.subr.mxu0 0.0
    %1462 = vmatpush1.msra.mxu0 0.0
    %1463 = vmatprep.subr.mxu0 0.0
    %1464 = vmatpush1.msra.mxu0 0.0
    %1465 = vmatprep.subr.mxu0 0.0
    %1466 = vmatpush1.msra.mxu0 0.0
    %1467 = vmatprep.subr.mxu0 0.0
    %1468 = vmatpush1.msra.mxu0 0.0
    %1469 = vmatprep.subr.mxu0 0.0
    %1470 = vmatpush1.msra.mxu0 0.0
    %1471 = vmatprep.subr.mxu0 0.0
    %1472 = vmatpush1.msra.mxu0 0.0
    %1473 = vmatprep.subr.mxu0 0.0
    %1474 = vmatpush1.msra.mxu0 0.0
    %1475 = vmatprep.subr.mxu0 0.0
    %1476 = vmatpush1.msra.mxu0 0.0
    %1477 = vmatprep.subr.mxu0 0.0
    %1478 = vmatpush1.msra.mxu0 0.0
    %1479 = vmatprep.subr.mxu0 0.0
    %1480 = vmatpush1.msra.mxu0 0.0
    %1481 = vmatprep.subr.mxu0 0.0
    %1482 = vmatpush1.msra.mxu0 0.0
    %1483 = vmatprep.subr.mxu0 0.0
    %1484 = vmatpush1.msra.mxu0 0.0
    %1485 = vmatprep.subr.mxu0 0.0
    %1486 = vmatpush1.msra.mxu0 0.0
    %1487 = vmatprep.subr.mxu0 0.0
    %1488 = vmatpush1.msra.mxu0 0.0
    %1489 = vmatprep.subr.mxu0 0.0
    %1490 = vmatpush1.msra.mxu0 0.0
    %1491 = vmatprep.subr.mxu0 0.0
    %1492 = vmatpush1.msra.mxu0 0.0
    %1493 = vmatprep.subr.mxu0 0.0
    %1494 = vmatpush1.msra.mxu0 0.0
    %1495 = vmatprep.subr.mxu0 0.0
    %1496 = vmatpush1.msra.mxu0 0.0
    %1497 = vmatprep.subr.mxu0 0.0
    %1498 = vmatpush1.msra.mxu0 0.0
    %1499 = vmatprep.subr.mxu0 0.0
    %1500 = vmatpush1.msra.mxu0 0.0
    %1501 = vmatprep.subr.mxu0 0.0
    %1502 = vmatpush1.msra.mxu0 0.0
    %1503 = vmatprep.subr.mxu0 0.0
    %1504 = vmatpush1.msra.mxu0 0.0
    %1505 = vmatprep.subr.mxu0 0.0
    %1506 = vmatpush1.msra.mxu0 0.0
    %1507 = vmatprep.mubr.f32.mxu0 0.0
    %1508 = vmatmul.mubr.f32.gmra.mrb[0].mxu0 %v1441
    %v1509 = vpop.f32.mrb[0].mxu0
    %v1510 = vadd.f32 0.0, %v1509
    %v1511 = vpop.f32.mrb[0].mxu0
    %1512 = vdwg.mxu0
    %v1513 = vadd.f32 %v1437, %v1510
    %v1514 = vtanh.pop %v1513
    %1515 = vmatprep.subr.mxu0 0.0
    %1516 = vmatpush1.msra.mxu0 %v918
    %1517 = vmatprep.subr.mxu0 0.0
    %1518 = vmatpush1.msra.mxu0 %v919
    %1519 = vmatprep.subr.mxu0 0.0
    %1520 = vmatpush1.msra.mxu0 %v920
    %1521 = vmatprep.subr.mxu0 0.0
    %1522 = vmatpush1.msra.mxu0 %v921
    %1523 = vmatprep.subr.mxu0 0.0
    %1524 = vmatpush1.msra.mxu0 0.0
    %1525 = vmatprep.subr.mxu0 0.0
    %1526 = vmatpush1.msra.mxu0 0.0
    %1527 = vmatprep.subr.mxu0 0.0
    %1528 = vmatpush1.msra.mxu0 0.0
    %1529 = vmatprep.subr.mxu0 0.0
    %1530 = vmatpush1.msra.mxu0 0.0
    %1531 = vmatprep.subr.mxu0 0.0
    %1532 = vmatpush1.msra.mxu0 0.0
    %1533 = vmatprep.subr.mxu0 0.0
    %1534 = vmatpush1.msra.mxu0 0.0
    %1535 = vmatprep.subr.mxu0 0.0
    %1536 = vmatpush1.msra.mxu0 0.0
    %1537 = vmatprep.subr.mxu0 0.0
    %1538 = vmatpush1.msra.mxu0 0.0
    %1539 = vmatprep.subr.mxu0 0.0
    %1540 = vmatpush1.msra.mxu0 0.0
    %1541 = vmatprep.subr.mxu0 0.0
    %1542 = vmatpush1.msra.mxu0 0.0
    %1543 = vmatprep.subr.mxu0 0.0
    %1544 = vmatpush1.msra.mxu0 0.0
    %1545 = vmatprep.subr.mxu0 0.0
    %1546 = vmatpush1.msra.mxu0 0.0
    %1547 = vmatprep.subr.mxu0 0.0
    %1548 = vmatpush1.msra.mxu0 0.0
    %1549 = vmatprep.subr.mxu0 0.0
    %1550 = vmatpush1.msra.mxu0 0.0
    %1551 = vmatprep.subr.mxu0 0.0
    %1552 = vmatpush1.msra.mxu0 0.0
    %1553 = vmatprep.subr.mxu0 0.0
    %1554 = vmatpush1.msra.mxu0 0.0
    %1555 = vmatprep.subr.mxu0 0.0
    %1556 = vmatpush1.msra.mxu0 0.0
    %1557 = vmatprep.subr.mxu0 0.0
    %1558 = vmatpush1.msra.mxu0 0.0
    %1559 = vmatprep.subr.mxu0 0.0
    %1560 = vmatpush1.msra.mxu0 0.0
    %1561 = vmatprep.subr.mxu0 0.0
    %1562 = vmatpush1.msra.mxu0 0.0
    %1563 = vmatprep.subr.mxu0 0.0
    %1564 = vmatpush1.msra.mxu0 0.0
    %1565 = vmatprep.subr.mxu0 0.0
    %1566 = vmatpush1.msra.mxu0 0.0
    %1567 = vmatprep.subr.mxu0 0.0
    %1568 = vmatpush1.msra.mxu0 0.0
    %1569 = vmatprep.subr.mxu0 0.0
    %1570 = vmatpush1.msra.mxu0 0.0
    %1571 = vmatprep.subr.mxu0 0.0
    %1572 = vmatpush1.msra.mxu0 0.0
    %1573 = vmatprep.subr.mxu0 0.0
    %1574 = vmatpush1.msra.mxu0 0.0
    %1575 = vmatprep.subr.mxu0 0.0
    %1576 = vmatpush1.msra.mxu0 0.0
    %1577 = vmatprep.subr.mxu0 0.0
    %1578 = vmatpush1.msra.mxu0 0.0
    %1579 = vmatprep.mubr.f32.mxu0 0.0
    %1580 = vmatmul.mubr.f32.gmra.mrb[0].mxu0 %v681
    %v1581 = vpop.f32.mrb[0].mxu0
    %v1582 = vadd.f32 %v933, %v1581
    %v1583 = vpop.f32.mrb[0].mxu0
    %1584 = vdwg.mxu0
    %v1586 = vsel %vm211, %v1514, 0
    %1588 = vmatprep.subr.mxu0 0.0
    %1589 = vmatpush1.msra.mxu0 %v922
    %1590 = vmatprep.subr.mxu0 0.0
    %1591 = vmatpush1.msra.mxu0 %v923
    %1592 = vmatprep.subr.mxu0 0.0
    %1593 = vmatpush1.msra.mxu0 %v924
    %1594 = vmatprep.subr.mxu0 0.0
    %1595 = vmatpush1.msra.mxu0 %v925
    %1596 = vmatprep.subr.mxu0 0.0
    %1597 = vmatpush1.msra.mxu0 0.0
    %1598 = vmatprep.subr.mxu0 0.0
    %1599 = vmatpush1.msra.mxu0 0.0
    %1600 = vmatprep.subr.mxu0 0.0
    %1601 = vmatpush1.msra.mxu0 0.0
    %1602 = vmatprep.subr.mxu0 0.0
    %1603 = vmatpush1.msra.mxu0 0.0
    %1604 = vmatprep.subr.mxu0 0.0
    %1605 = vmatpush1.msra.mxu0 0.0
    %1606 = vmatprep.subr.mxu0 0.0
    %1607 = vmatpush1.msra.mxu0 0.0
    %1608 = vmatprep.subr.mxu0 0.0
    %1609 = vmatpush1.msra.mxu0 0.0
    %1610 = vmatprep.subr.mxu0 0.0
    %1611 = vmatpush1.msra.mxu0 0.0
    %1612 = vmatprep.subr.mxu0 0.0
    %1613 = vmatpush1.msra.mxu0 0.0
    %1614 = vmatprep.subr.mxu0 0.0
    %1615 = vmatpush1.msra.mxu0 0.0
    %1616 = vmatprep.subr.mxu0 0.0
    %1617 = vmatpush1.msra.mxu0 0.0
    %1618 = vmatprep.subr.mxu0 0.0
    %1619 = vmatpush1.msra.mxu0 0.0
    %1620 = vmatprep.subr.mxu0 0.0
    %1621 = vmatpush1.msra.mxu0 0.0
    %1622 = vmatprep.subr.mxu0 0.0
    %1623 = vmatpush1.msra.mxu0 0.0
    %1624 = vmatprep.subr.mxu0 0.0
    %1625 = vmatpush1.msra.mxu0 0.0
    %1626 = vmatprep.subr.mxu0 0.0
    %1627 = vmatpush1.msra.mxu0 0.0
    %1628 = vmatprep.subr.mxu0 0.0
    %1629 = vmatpush1.msra.mxu0 0.0
    %1630 = vmatprep.subr.mxu0 0.0
    %1631 = vmatpush1.msra.mxu0 0.0
    %1632 = vmatprep.subr.mxu0 0.0
    %1633 = vmatpush1.msra.mxu0 0.0
    %1634 = vmatprep.subr.mxu0 0.0
    %1635 = vmatpush1.msra.mxu0 0.0
    %1636 = vmatprep.subr.mxu0 0.0
    %1637 = vmatpush1.msra.mxu0 0.0
    %1638 = vmatprep.subr.mxu0 0.0
    %1639 = vmatpush1.msra.mxu0 0.0
    %1640 = vmatprep.subr.mxu0 0.0
    %1641 = vmatpush1.msra.mxu0 0.0
    %1642 = vmatprep.subr.mxu0 0.0
    %1643 = vmatpush1.msra.mxu0 0.0
    %1644 = vmatprep.subr.mxu0 0.0
    %1645 = vmatpush1.msra.mxu0 0.0
    %1646 = vmatprep.subr.mxu0 0.0
    %1647 = vmatpush1.msra.mxu0 0.0
    %1648 = vmatprep.subr.mxu0 0.0
    %1649 = vmatpush1.msra.mxu0 0.0
    %1650 = vmatprep.subr.mxu0 0.0
    %1651 = vmatpush1.msra.mxu0 0.0
    %1652 = vmatprep.mubr.f32.mxu0 0.0
    %1653 = vmatmul.mubr.f32.gmra.mrb[0].mxu0 %v1586
    %v1654 = vpop.f32.mrb[0].mxu0
    %v1655 = vadd.f32 0.0, %v1654
    %v1656 = vpop.f32.mrb[0].mxu0
    %1657 = vdwg.mxu0
    %v1658 = vadd.f32 %v1582, %v1655
    %v1659 = vtanh.pop %v1658
    %1660 = vmatprep.subr.mxu0 0.0
    %1661 = vmatpush1.msra.mxu0 %v918
    %1662 = vmatprep.subr.mxu0 0.0
    %1663 = vmatpush1.msra.mxu0 %v919
    %1664 = vmatprep.subr.mxu0 0.0
    %1665 = vmatpush1.msra.mxu0 %v920
    %1666 = vmatprep.subr.mxu0 0.0
    %1667 = vmatpush1.msra.mxu0 %v921
    %1668 = vmatprep.subr.mxu0 0.0
    %1669 = vmatpush1.msra.mxu0 0.0
    %1670 = vmatprep.subr.mxu0 0.0
    %1671 = vmatpush1.msra.mxu0 0.0
    %1672 = vmatprep.subr.mxu0 0.0
    %1673 = vmatpush1.msra.mxu0 0.0
    %1674 = vmatprep.subr.mxu0 0.0
    %1675 = vmatpush1.msra.mxu0 0.0
    %1676 = vmatprep.subr.mxu0 0.0
    %1677 = vmatpush1.msra.mxu0 0.0
    %1678 = vmatprep.subr.mxu0 0.0
    %1679 = vmatpush1.msra.mxu0 0.0
    %1680 = vmatprep.subr.mxu0 0.0
    %1681 = vmatpush1.msra.mxu0 0.0
    %1682 = vmatprep.subr.mxu0 0.0
    %1683 = vmatpush1.msra.mxu0 0.0
    %1684 = vmatprep.subr.mxu0 0.0
    %1685 = vmatpush1.msra.mxu0 0.0
    %1686 = vmatprep.subr.mxu0 0.0
    %1687 = vmatpush1.msra.mxu0 0.0
    %1688 = vmatprep.subr.mxu0 0.0
    %1689 = vmatpush1.msra.mxu0 0.0
    %1690 = vmatprep.subr.mxu0 0.0
    %1691 = vmatpush1.msra.mxu0 0.0
    %1692 = vmatprep.subr.mxu0 0.0
    %1693 = vmatpush1.msra.mxu0 0.0
    %1694 = vmatprep.subr.mxu0 0.0
    %1695 = vmatpush1.msra.mxu0 0.0
    %1696 = vmatprep.subr.mxu0 0.0
    %1697 = vmatpush1.msra.mxu0 0.0
    %1698 = vmatprep.subr.mxu0 0.0
    %1699 = vmatpush1.msra.mxu0 0.0
    %1700 = vmatprep.subr.mxu0 0.0
    %1701 = vmatpush1.msra.mxu0 0.0
    %1702 = vmatprep.subr.mxu0 0.0
    %1703 = vmatpush1.msra.mxu0 0.0
    %1704 = vmatprep.subr.mxu0 0.0
    %1705 = vmatpush1.msra.mxu0 0.0
    %1706 = vmatprep.subr.mxu0 0.0
    %1707 = vmatpush1.msra.mxu0 0.0
    %1708 = vmatprep.subr.mxu0 0.0
    %1709 = vmatpush1.msra.mxu0 0.0
    %1710 = vmatprep.subr.mxu0 0.0
    %1711 = vmatpush1.msra.mxu0 0.0
    %1712 = vmatprep.subr.mxu0 0.0
    %1713 = vmatpush1.msra.mxu0 0.0
    %1714 = vmatprep.subr.mxu0 0.0
    %1715 = vmatpush1.msra.mxu0 0.0
    %1716 = vmatprep.subr.mxu0 0.0
    %1717 = vmatpush1.msra.mxu0 0.0
    %1718 = vmatprep.subr.mxu0 0.0
    %1719 = vmatpush1.msra.mxu0 0.0
    %1720 = vmatprep.subr.mxu0 0.0
    %1721 = vmatpush1.msra.mxu0 0.0
    %1722 = vmatprep.subr.mxu0 0.0
    %1723 = vmatpush1.msra.mxu0 0.0
    %1724 = vmatprep.mubr.f32.mxu0 0.0
    %1725 = vmatmul.mubr.f32.gmra.mrb[0].mxu0 %v760
    %v1726 = vpop.f32.mrb[0].mxu0
    %v1727 = vadd.f32 %v933, %v1726
    %v1728 = vpop.f32.mrb[0].mxu0
    %1729 = vdwg.mxu0
    %v1731 = vsel %vm211, %v1659, 0
    %1733 = vmatprep.subr.mxu0 0.0
    %1734 = vmatpush1.msra.mxu0 %v922
    %1735 = vmatprep.subr.mxu0 0.0
    %1736 = vmatpush1.msra.mxu0 %v923
    %1737 = vmatprep.subr.mxu0 0.0
    %1738 = vmatpush1.msra.mxu0 %v924
    %1739 = vmatprep.subr.mxu0 0.0
    %1740 = vmatpush1.msra.mxu0 %v925
    %1741 = vmatprep.subr.mxu0 0.0
    %1742 = vmatpush1.msra.mxu0 0.0
    %1743 = vmatprep.subr.mxu0 0.0
    %1744 = vmatpush1.msra.mxu0 0.0
    %1745 = vmatprep.subr.mxu0 0.0
    %1746 = vmatpush1.msra.mxu0 0.0
    %1747 = vmatprep.subr.mxu0 0.0
    %1748 = vmatpush1.msra.mxu0 0.0
    %1749 = vmatprep.subr.mxu0 0.0
    %1750 = vmatpush1.msra.mxu0 0.0
    %1751 = vmatprep.subr.mxu0 0.0
    %1752 = vmatpush1.msra.mxu0 0.0
    %1753 = vmatprep.subr.mxu0 0.0
    %1754 = vmatpush1.msra.mxu0 0.0
    %1755 = vmatprep.subr.mxu0 0.0
    %1756 = vmatpush1.msra.mxu0 0.0
    %1757 = vmatprep.subr.mxu0 0.0
    %1758 = vmatpush1.msra.mxu0 0.0
    %1759 = vmatprep.subr.mxu0 0.0
    %1760 = vmatpush1.msra.mxu0 0.0
    %1761 = vmatprep.subr.mxu0 0.0
    %1762 = vmatpush1.msra.mxu0 0.0
    %1763 = vmatprep.subr.mxu0 0.0
    %1764 = vmatpush1.msra.mxu0 0.0
    %1765 = vmatprep.subr.mxu0 0.0
    %1766 = vmatpush1.msra.mxu0 0.0
    %1767 = vmatprep.subr.mxu0 0.0
    %1768 = vmatpush1.msra.mxu0 0.0
    %1769 = vmatprep.subr.mxu0 0.0
    %1770 = vmatpush1.msra.mxu0 0.0
    %1771 = vmatprep.subr.mxu0 0.0
    %1772 = vmatpush1.msra.mxu0 0.0
    %1773 = vmatprep.subr.mxu0 0.0
    %1774 = vmatpush1.msra.mxu0 0.0
    %1775 = vmatprep.subr.mxu0 0.0
    %1776 = vmatpush1.msra.mxu0 0.0
    %1777 = vmatprep.subr.mxu0 0.0
    %1778 = vmatpush1.msra.mxu0 0.0
    %1779 = vmatprep.subr.mxu0 0.0
    %1780 = vmatpush1.msra.mxu0 0.0
    %1781 = vmatprep.subr.mxu0 0.0
    %1782 = vmatpush1.msra.mxu0 0.0
    %1783 = vmatprep.subr.mxu0 0.0
    %1784 = vmatpush1.msra.mxu0 0.0
    %1785 = vmatprep.subr.mxu0 0.0
    %1786 = vmatpush1.msra.mxu0 0.0
    %1787 = vmatprep.subr.mxu0 0.0
    %1788 = vmatpush1.msra.mxu0 0.0
    %1789 = vmatprep.subr.mxu0 0.0
    %1790 = vmatpush1.msra.mxu0 0.0
    %1791 = vmatprep.subr.mxu0 0.0
    %1792 = vmatpush1.msra.mxu0 0.0
    %1793 = vmatprep.subr.mxu0 0.0
    %1794 = vmatpush1.msra.mxu0 0.0
    %1795 = vmatprep.subr.mxu0 0.0
    %1796 = vmatpush1.msra.mxu0 0.0
    %1797 = vmatprep.mubr.f32.mxu0 0.0
    %1798 = vmatmul.mubr.f32.gmra.mrb[0].mxu0 %v1731
    %v1799 = vpop.f32.mrb[0].mxu0
    %v1800 = vadd.f32 0.0, %v1799
    %v1801 = vpop.f32.mrb[0].mxu0
    %1802 = vdwg.mxu0
    %v1803 = vadd.f32 %v1727, %v1800
    %v1804 = vtanh.pop %v1803
    %1805 = vmatprep.subr.mxu0 0.0
    %1806 = vmatpush1.msra.mxu0 %v918
    %1807 = vmatprep.subr.mxu0 0.0
    %1808 = vmatpush1.msra.mxu0 %v919
    %1809 = vmatprep.subr.mxu0 0.0
    %1810 = vmatpush1.msra.mxu0 %v920
    %1811 = vmatprep.subr.mxu0 0.0
    %1812 = vmatpush1.msra.mxu0 %v921
    %1813 = vmatprep.subr.mxu0 0.0
    %1814 = vmatpush1.msra.mxu0 0.0
    %1815 = vmatprep.subr.mxu0 0.0
    %1816 = vmatpush1.msra.mxu0 0.0
    %1817 = vmatprep.subr.mxu0 0.0
    %1818 = vmatpush1.msra.mxu0 0.0
    %1819 = vmatprep.subr.mxu0 0.0
    %1820 = vmatpush1.msra.mxu0 0.0
    %1821 = vmatprep.subr.mxu0 0.0
    %1822 = vmatpush1.msra.mxu0 0.0
    %1823 = vmatprep.subr.mxu0 0.0
    %1824 = vmatpush1.msra.mxu0 0.0
    %1825 = vmatprep.subr.mxu0 0.0
    %1826 = vmatpush1.msra.mxu0 0.0
    %1827 = vmatprep.subr.mxu0 0.0
    %1828 = vmatpush1.msra.mxu0 0.0
    %1829 = vmatprep.subr.mxu0 0.0
    %1830 = vmatpush1.msra.mxu0 0.0
    %1831 = vmatprep.subr.mxu0 0.0
    %1832 = vmatpush1.msra.mxu0 0.0
    %1833 = vmatprep.subr.mxu0 0.0
    %1834 = vmatpush1.msra.mxu0 0.0
    %1835 = vmatprep.subr.mxu0 0.0
    %1836 = vmatpush1.msra.mxu0 0.0
    %1837 = vmatprep.subr.mxu0 0.0
    %1838 = vmatpush1.msra.mxu0 0.0
    %1839 = vmatprep.subr.mxu0 0.0
    %1840 = vmatpush1.msra.mxu0 0.0
    %1841 = vmatprep.subr.mxu0 0.0
    %1842 = vmatpush1.msra.mxu0 0.0
    %1843 = vmatprep.subr.mxu0 0.0
    %1844 = vmatpush1.msra.mxu0 0.0
    %1845 = vmatprep.subr.mxu0 0.0
    %1846 = vmatpush1.msra.mxu0 0.0
    %1847 = vmatprep.subr.mxu0 0.0
    %1848 = vmatpush1.msra.mxu0 0.0
    %1849 = vmatprep.subr.mxu0 0.0
    %1850 = vmatpush1.msra.mxu0 0.0
    %1851 = vmatprep.subr.mxu0 0.0
    %1852 = vmatpush1.msra.mxu0 0.0
    %1853 = vmatprep.subr.mxu0 0.0
    %1854 = vmatpush1.msra.mxu0 0.0
    %1855 = vmatprep.subr.mxu0 0.0
    %1856 = vmatpush1.msra.mxu0 0.0
    %1857 = vmatprep.subr.mxu0 0.0
    %1858 = vmatpush1.msra.mxu0 0.0
    %1859 = vmatprep.subr.mxu0 0.0
    %1860 = vmatpush1.msra.mxu0 0.0
    %1861 = vmatprep.subr.mxu0 0.0
    %1862 = vmatpush1.msra.mxu0 0.0
    %1863 = vmatprep.subr.mxu0 0.0
    %1864 = vmatpush1.msra.mxu0 0.0
    %1865 = vmatprep.subr.mxu0 0.0
    %1866 = vmatpush1.msra.mxu0 0.0
    %1867 = vmatprep.subr.mxu0 0.0
    %1868 = vmatpush1.msra.mxu0 0.0
    %1869 = vmatprep.mubr.f32.mxu0 0.0
    %1870 = vmatmul.mubr.f32.gmra.mrb[0].mxu0 %v839
    %v1871 = vpop.f32.mrb[0].mxu0
    %v1872 = vadd.f32 %v933, %v1871
    %v1873 = vpop.f32.mrb[0].mxu0
    %1874 = vdwg.mxu0
    %v1876 = vsel %vm211, %v1804, 0
    %1878 = vmatprep.subr.mxu0 0.0
    %1879 = vmatpush1.msra.mxu0 %v922
    %1880 = vmatprep.subr.mxu0 0.0
    %1881 = vmatpush1.msra.mxu0 %v923
    %1882 = vmatprep.subr.mxu0 0.0
    %1883 = vmatpush1.msra.mxu0 %v924
    %1884 = vmatprep.subr.mxu0 0.0
    %1885 = vmatpush1.msra.mxu0 %v925
    %1886 = vmatprep.subr.mxu0 0.0
    %1887 = vmatpush1.msra.mxu0 0.0
    %1888 = vmatprep.subr.mxu0 0.0
    %1889 = vmatpush1.msra.mxu0 0.0
    %1890 = vmatprep.subr.mxu0 0.0
    %1891 = vmatpush1.msra.mxu0 0.0
    %1892 = vmatprep.subr.mxu0 0.0
    %1893 = vmatpush1.msra.mxu0 0.0
    %1894 = vmatprep.subr.mxu0 0.0
    %1895 = vmatpush1.msra.mxu0 0.0
    %1896 = vmatprep.subr.mxu0 0.0
    %1897 = vmatpush1.msra.mxu0 0.0
    %1898 = vmatprep.subr.mxu0 0.0
    %1899 = vmatpush1.msra.mxu0 0.0
    %1900 = vmatprep.subr.mxu0 0.0
    %1901 = vmatpush1.msra.mxu0 0.0
    %1902 = vmatprep.subr.mxu0 0.0
    %1903 = vmatpush1.msra.mxu0 0.0
    %1904 = vmatprep.subr.mxu0 0.0
    %1905 = vmatpush1.msra.mxu0 0.0
    %1906 = vmatprep.subr.mxu0 0.0
    %1907 = vmatpush1.msra.mxu0 0.0
    %1908 = vmatprep.subr.mxu0 0.0
    %1909 = vmatpush1.msra.mxu0 0.0
    %1910 = vmatprep.subr.mxu0 0.0
    %1911 = vmatpush1.msra.mxu0 0.0
    %1912 = vmatprep.subr.mxu0 0.0
    %1913 = vmatpush1.msra.mxu0 0.0
    %1914 = vmatprep.subr.mxu0 0.0
    %1915 = vmatpush1.msra.mxu0 0.0
    %1916 = vmatprep.subr.mxu0 0.0
    %1917 = vmatpush1.msra.mxu0 0.0
    %1918 = vmatprep.subr.mxu0 0.0
    %1919 = vmatpush1.msra.mxu0 0.0
    %1920 = vmatprep.subr.mxu0 0.0
    %1921 = vmatpush1.msra.mxu0 0.0
    %1922 = vmatprep.subr.mxu0 0.0
    %1923 = vmatpush1.msra.mxu0 0.0
    %1924 = vmatprep.subr.mxu0 0.0
    %1925 = vmatpush1.msra.mxu0 0.0
    %1926 = vmatprep.subr.mxu0 0.0
    %1927 = vmatpush1.msra.mxu0 0.0
    %1928 = vmatprep.subr.mxu0 0.0
    %1929 = vmatpush1.msra.mxu0 0.0
    %1930 = vmatprep.subr.mxu0 0.0
    %1931 = vmatpush1.msra.mxu0 0.0
    %1932 = vmatprep.subr.mxu0 0.0
    %1933 = vmatpush1.msra.mxu0 0.0
    %1934 = vmatprep.subr.mxu0 0.0
    %1935 = vmatpush1.msra.mxu0 0.0
    %1936 = vmatprep.subr.mxu0 0.0
    %1937 = vmatpush1.msra.mxu0 0.0
    %1938 = vmatprep.subr.mxu0 0.0
    %1939 = vmatpush1.msra.mxu0 0.0
    %1940 = vmatprep.subr.mxu0 0.0
    %1941 = vmatpush1.msra.mxu0 0.0
    %1942 = vmatprep.mubr.f32.mxu0 0.0
    %1943 = vmatmul.mubr.f32.gmra.mrb[0].mxu0 %v1876
    %v1944 = vpop.f32.mrb[0].mxu0
    %v1945 = vadd.f32 0.0, %v1944
    %v1946 = vpop.f32.mrb[0].mxu0
    %1947 = vdwg.mxu0
    %v1948 = vadd.f32 %v1872, %v1945
    %v1949 = vtanh.pop %v1948
    %v1951 = vrot.slane %v915, 6
    %v1952 = vsel %vm211, %v1951, 0
    %1954 = vmatprep.subr.mxu0 0.0
    %1955 = vmatpush1.msra.mxu0 %v918
    %1956 = vmatprep.subr.mxu0 0.0
    %1957 = vmatpush1.msra.mxu0 %v919
    %1958 = vmatprep.subr.mxu0 0.0
    %1959 = vmatpush1.msra.mxu0 %v920
    %1960 = vmatprep.subr.mxu0 0.0
    %1961 = vmatpush1.msra.mxu0 %v921
    %1962 = vmatprep.subr.mxu0 0.0
    %1963 = vmatpush1.msra.mxu0 0.0
    %1964 = vmatprep.subr.mxu0 0.0
    %1965 = vmatpush1.msra.mxu0 0.0
    %1966 = vmatprep.subr.mxu0 0.0
    %1967 = vmatpush1.msra.mxu0 0.0
    %1968 = vmatprep.subr.mxu0 0.0
    %1969 = vmatpush1.msra.mxu0 0.0
    %1970 = vmatprep.subr.mxu0 0.0
    %1971 = vmatpush1.msra.mxu0 0.0
    %1972 = vmatprep.subr.mxu0 0.0
    %1973 = vmatpush1.msra.mxu0 0.0
    %1974 = vmatprep.subr.mxu0 0.0
    %1975 = vmatpush1.msra.mxu0 0.0
    %1976 = vmatprep.subr.mxu0 0.0
    %1977 = vmatpush1.msra.mxu0 0.0
    %1978 = vmatprep.subr.mxu0 0.0
    %1979 = vmatpush1.msra.mxu0 0.0
    %1980 = vmatprep.subr.mxu0 0.0
    %1981 = vmatpush1.msra.mxu0 0.0
    %1982 = vmatprep.subr.mxu0 0.0
    %1983 = vmatpush1.msra.mxu0 0.0
    %1984 = vmatprep.subr.mxu0 0.0
    %1985 = vmatpush1.msra.mxu0 0.0
    %1986 = vmatprep.subr.mxu0 0.0
    %1987 = vmatpush1.msra.mxu0 0.0
    %1988 = vmatprep.subr.mxu0 0.0
    %1989 = vmatpush1.msra.mxu0 0.0
    %1990 = vmatprep.subr.mxu0 0.0
    %1991 = vmatpush1.msra.mxu0 0.0
    %1992 = vmatprep.subr.mxu0 0.0
    %1993 = vmatpush1.msra.mxu0 0.0
    %1994 = vmatprep.subr.mxu0 0.0
    %1995 = vmatpush1.msra.mxu0 0.0
    %1996 = vmatprep.subr.mxu0 0.0
    %1997 = vmatpush1.msra.mxu0 0.0
    %1998 = vmatprep.subr.mxu0 0.0
    %1999 = vmatpush1.msra.mxu0 0.0
    %2000 = vmatprep.subr.mxu0 0.0
    %2001 = vmatpush1.msra.mxu0 0.0
    %2002 = vmatprep.subr.mxu0 0.0
    %2003 = vmatpush1.msra.mxu0 0.0
    %2004 = vmatprep.subr.mxu0 0.0
    %2005 = vmatpush1.msra.mxu0 0.0
    %2006 = vmatprep.subr.mxu0 0.0
    %2007 = vmatpush1.msra.mxu0 0.0
    %2008 = vmatprep.subr.mxu0 0.0
    %2009 = vmatpush1.msra.mxu0 0.0
    %2010 = vmatprep.subr.mxu0 0.0
    %2011 = vmatpush1.msra.mxu0 0.0
    %2012 = vmatprep.subr.mxu0 0.0
    %2013 = vmatpush1.msra.mxu0 0.0
    %2014 = vmatprep.subr.mxu0 0.0
    %2015 = vmatpush1.msra.mxu0 0.0
    %2016 = vmatprep.subr.mxu0 0.0
    %2017 = vmatpush1.msra.mxu0 0.0
    %2018 = vmatprep.mubr.f32.mxu0 0.0
    %2019 = vmatmul.mubr.f32.gmra.mrb[0].mxu0 %v1952
    %v2020 = vpop.f32.mrb[0].mxu0
    %v2021 = vadd.f32 %v933, %v2020
    %v2022 = vpop.f32.mrb[0].mxu0
    %2023 = vdwg.mxu0
    %v2025 = vsel %vm211, %v1949, 0
    %2027 = vmatprep.subr.mxu0 0.0
    %2028 = vmatpush1.msra.mxu0 %v922
    %2029 = vmatprep.subr.mxu0 0.0
    %2030 = vmatpush1.msra.mxu0 %v923
    %2031 = vmatprep.subr.mxu0 0.0
    %2032 = vmatpush1.msra.mxu0 %v924
    %2033 = vmatprep.subr.mxu0 0.0
    %2034 = vmatpush1.msra.mxu0 %v925
    %2035 = vmatprep.subr.mxu0 0.0
    %2036 = vmatpush1.msra.mxu0 0.0
    %2037 = vmatprep.subr.mxu0 0.0
    %2038 = vmatpush1.msra.mxu0 0.0
    %2039 = vmatprep.subr.mxu0 0.0
    %2040 = vmatpush1.msra.mxu0 0.0
    %2041 = vmatprep.subr.mxu0 0.0
    %2042 = vmatpush1.msra.mxu0 0.0
    %2043 = vmatprep.subr.mxu0 0.0
    %2044 = vmatpush1.msra.mxu0 0.0
    %2045 = vmatprep.subr.mxu0 0.0
    %2046 = vmatpush1.msra.mxu0 0.0
    %2047 = vmatprep.subr.mxu0 0.0
    %2048 = vmatpush1.msra.mxu0 0.0
    %2049 = vmatprep.subr.mxu0 0.0
    %2050 = vmatpush1.msra.mxu0 0.0
    %2051 = vmatprep.subr.mxu0 0.0
    %2052 = vmatpush1.msra.mxu0 0.0
    %2053 = vmatprep.subr.mxu0 0.0
    %2054 = vmatpush1.msra.mxu0 0.0
    %2055 = vmatprep.subr.mxu0 0.0
    %2056 = vmatpush1.msra.mxu0 0.0
    %2057 = vmatprep.subr.mxu0 0.0
    %2058 = vmatpush1.msra.mxu0 0.0
    %2059 = vmatprep.subr.mxu0 0.0
    %2060 = vmatpush1.msra.mxu0 0.0
    %2061 = vmatprep.subr.mxu0 0.0
    %2062 = vmatpush1.msra.mxu0 0.0
    %2063 = vmatprep.subr.mxu0 0.0
    %2064 = vmatpush1.msra.mxu0 0.0
    %2065 = vmatprep.subr.mxu0 0.0
    %2066 = vmatpush1.msra.mxu0 0.0
    %2067 = vmatprep.subr.mxu0 0.0
    %2068 = vmatpush1.msra.mxu0 0.0
    %2069 = vmatprep.subr.mxu0 0.0
    %2070 = vmatpush1.msra.mxu0 0.0
    %2071 = vmatprep.subr.mxu0 0.0
    %2072 = vmatpush1.msra.mxu0 0.0
    %2073 = vmatprep.subr.mxu0 0.0
    %2074 = vmatpush1.msra.mxu0 0.0
    %2075 = vmatprep.subr.mxu0 0.0
    %2076 = vmatpush1.msra.mxu0 0.0
    %2077 = vmatprep.subr.mxu0 0.0
    %2078 = vmatpush1.msra.mxu0 0.0
    %2079 = vmatprep.subr.mxu0 0.0
    %2080 = vmatpush1.msra.mxu0 0.0
    %2081 = vmatprep.subr.mxu0 0.0
    %2082 = vmatpush1.msra.mxu0 0.0
    %2083 = vmatprep.subr.mxu0 0.0
    %2084 = vmatpush1.msra.mxu0 0.0
    %2085 = vmatprep.subr.mxu0 0.0
    %2086 = vmatpush1.msra.mxu0 0.0
    %2087 = vmatprep.subr.mxu0 0.0
    %2088 = vmatpush1.msra.mxu0 0.0
    %2089 = vmatprep.subr.mxu0 0.0
    %2090 = vmatpush1.msra.mxu0 0.0
    %2091 = vmatprep.mubr.f32.mxu0 0.0
    %2092 = vmatmul.mubr.f32.gmra.mrb[0].mxu0 %v2025
    %v2093 = vpop.f32.mrb[0].mxu0
    %v2094 = vadd.f32 0.0, %v2093
    %v2095 = vpop.f32.mrb[0].mxu0
    %2096 = vdwg.mxu0
    %v2097 = vadd.f32 %v2021, %v2094
    %v2098 = vtanh.pop %v2097
    %s2099 = scalar_lea.vmem [#allocation10], 2
    %vm2100 = vcmask 254976
    %2101 = vst.msk [vmem:[%s2099] sm:$0x3] %vm2100, %v2098
    %2102 = vst.msk [vmem:[%s9] sm:$0x3] %vm2100, %v1079
    %s2103 = scalar_lea.vmem %s9, 2
    %2104 = vst.msk [vmem:[%s2103] sm:$0x3] %vm2100, %v1224
    %s2105 = scalar_lea.vmem %s9, 4
    %2106 = vst.msk [vmem:[%s2105] sm:$0x3] %vm2100, %v1369
    %s2107 = scalar_lea.vmem %s9, 6
    %2108 = vst.msk [vmem:[%s2107] sm:$0x3] %vm2100, %v1514
    %s2109 = scalar_lea.vmem %s9, 8
    %2110 = vst.msk [vmem:[%s2109] sm:$0x3] %vm2100, %v1659
    %s2111 = scalar_lea.vmem %s9, 10
    %2112 = vst.msk [vmem:[%s2111] sm:$0x3] %vm2100, %v1804
    %s2113 = scalar_lea.vmem %s9, 12
    %2114 = vst.msk [vmem:[%s2113] sm:$0x3] %vm2100, %v1949
    %s2115 = scalar_lea.vmem %s9, 14
    %2116 = vst.msk [vmem:[%s2115] sm:$0x3] %vm2100, %v2098
    // Predicated region
    $region54: #{encoder_forward.1} parent=1 // pred_check
      _
    $region55: #{encoder_forward.1} parent=1 // pred_check_branch
      %2118 = sbr.rel (0) target = $region57
    $region56: #{encoder_forward.1} parent=1 // pred_region
      _
    $region57: #{encoder_forward.1} parent=1 // pred_fallthru
      _
    // Predicated region
    $region58: #{encoder_forward.1} parent=1 // pred_check
      _
    $region59: #{encoder_forward.1} parent=1 // pred_check_branch
      %2120 = sbr.rel (0) target = $region61
    $region60: #{encoder_forward.1} parent=1 // pred_region
      %s2122 = ssub.s32 64, 64
      %2123 = vsyncadd [#allocation4], %s2122
      %s2124 = sshll.u32 [#allocation10], 4
      %s2125 = int_to_ptr.vmem [resolvable:$true] %s2124
      %2130 = dma.vmem_to_hbm [thread:$0]  %s2125, 64, %s10, [#allocation4], 32, 32, 2
    $region61: #{encoder_forward.1} parent=1 // pred_fallthru
      _
    // Predicated region
    $region62: #{encoder_forward.1} parent=1 // pred_check
      _
    $region63: #{encoder_forward.1} parent=1 // pred_check_branch
      %2132 = sbr.rel (0) target = $region65
    $region64: #{encoder_forward.1} parent=1 // pred_region
      _
    $region65: #{encoder_forward.1} parent=1 // pred_fallthru
      _
    // Predicated region
    $region66: #{encoder_forward.1} parent=1 // pred_check
      _
    $region67: #{encoder_forward.1} parent=1 // pred_check_branch
      %2134 = sbr.rel (0) target = $region69
    $region68: #{encoder_forward.1} parent=1 // pred_region
      %2135 = dma.done [#allocation4], 64
    $region69: #{encoder_forward.1} parent=1 // pred_fallthru
      _
    %2136 = vsyncpa [#allocation3], 1
    %2137 = vsyncpa [#allocation6], 1
    %2138 = vsyncpa [#allocation9], 1
    %2139 = vsyncpa [#allocation4], 1

</llo_original>
